<compile_context>
chip_gen: v5e
topology: v5e:2x2
jax: 0.10.0
libtpu: 0.0.40
codegen_flags: <defaults>
</compile_context>

<pallas_src>
import functools

import numpy as np
import jax
import jax.numpy as jnp
from jax.experimental import pallas as pl
from jax.experimental.pallas import tpu as pltpu


# ----------------------------- synthetic args --------------------------------
class Args:
    h_w_wheels_joints_size = 32
    hidden_size = 8
    image_size = 16
    divisions = 2
    touch_shape = 6
    joint_aspects = 2
    max_voice_len = 4
    voice_shape = 5
    dropout = 0.1
    half = False


VMEM = pl.BlockSpec(memory_space=pltpu.MemorySpace.VMEM)


# ------------------------------- fused kernel ---------------------------------
def _obs_out_kernel(x_ref, wbig_ref, aff_ref, conv_ref, gru_ref, vis_ref, tv_ref,
                    *, hw, C, cps, r, L, H, V, Td):
    B = x_ref.shape[0]
    vis_feat = C * hw * hw
    Cout = cps * r * r
    kw = (hw + 2) * C                     # K of each banded conv matmul
    G = 2 * H                             # per-gate width (both voice heads in lanes)

    # ---- one MXU pass for every Linear that consumes x ----
    y = jnp.dot(x_ref[...], wbig_ref[...], preferred_element_type=jnp.float32)
    # folded eval-BatchNorm / linear-bias affine, then per-lane PReLU
    y = y * aff_ref[0:1, :] + aff_ref[1:2, :]
    y = jnp.where(y >= 0.0, y, aff_ref[2:3, :] * y)

    # ---------------- vision: reflect pad + 3x3 conv + pixel-shuffled lanes ----------------
    a3 = y[:, :vis_feat].reshape(B, hw, hw * C)             # rows (b,h), lanes (w,c)
    # reflect pad (pad=1, no edge repeat): width (lanes) then height (sublanes)
    a3 = jnp.concatenate(
        [a3[:, :, C:2 * C], a3, a3[:, :, (hw - 2) * C:(hw - 1) * C]], axis=2)
    a3 = jnp.concatenate(
        [a3[:, 1:2, :], a3, a3[:, hw - 2:hw - 1, :]], axis=1)          # (B, hw+2, kw)

    acc = jnp.zeros((B * hw, hw * Cout), jnp.float32)
    for ky in range(3):                    # conv as 3 block-banded matmuls
        lhs = a3[:, ky:ky + hw, :].reshape(B * hw, kw)      # layout-preserving merge
        acc = acc + jnp.dot(lhs, conv_ref[ky * kw:(ky + 1) * kw, :],
                            preferred_element_type=jnp.float32)
    acc = acc + conv_ref[3 * kw:3 * kw + 1, :]              # conv bias row
    o = (jnp.tanh(acc) + 1.0) * 0.5                         # (B*hw, 128), lanes (c, i, W)

    lpc = r * r * hw                                        # lanes per output channel
    vis_ref[...] = jnp.concatenate(
        [o[:, c * lpc:(c + 1) * lpc].reshape(B, hw, lpc) for c in range(cps)],
        axis=1).astype(vis_ref.dtype)                       # (B, cps*hw, r*hw*r): pixel-shuffled

    # ---------------- touch ----------------
    touch = (jnp.tanh(y[:, vis_feat:vis_feat + Td]) + 1.0) * 0.5       # (B, Td)

    # ---------------- both voice heads (folded into lanes) ----------------
    a = y[:, vis_feat + Td:]                                # (B, 2*L*H) = [cmd | rep]
    WI0, WH0 = 0, 2 * L * H
    MU0 = WH0 + 2 * H
    BI = MU0 + 2 * L * H
    BH = BI + 1
    MB = BI + 2

    # all L timesteps x 2 heads of input-gate projections in ONE matmul
    gi = jnp.dot(a, gru_ref[WI0:WH0, :], preferred_element_type=jnp.float32) \
        + gru_ref[BI:BI + 1, :]                             # (B, 2*L*3H), layout (t, gate, head, u)

    wh = gru_ref[WH0:MU0, 0:3 * G]                          # (2H, 2*3H) block-diag recurrent
    bh = gru_ref[BH:BH + 1, 0:3 * G]
    h = jnp.zeros((B, G), jnp.float32)                      # [h_cmd | h_rep]
    hs = []
    for t in range(L):                                      # static, L is tiny
        gh = jnp.dot(h, wh, preferred_element_type=jnp.float32) + bh   # (B, 3G)
        git = gi[:, t * 3 * G:(t + 1) * 3 * G]
        rg = jax.nn.sigmoid(git[:, 0:G] + gh[:, 0:G])
        zg = jax.nn.sigmoid(git[:, G:2 * G] + gh[:, G:2 * G])
        ng = jnp.tanh(git[:, 2 * G:3 * G] + rg * gh[:, 2 * G:3 * G])
        h = (1.0 - zg) * ng + zg * h
        hs.append(h)

    h_all = jnp.concatenate(hs, axis=1)                     # (B, L*2H), layout (t, head, u)
    mu = jnp.dot(h_all, gru_ref[MU0:BI, 0:2 * L * V],
                 preferred_element_type=jnp.float32) + gru_ref[MB:MB + 1, 0:2 * L * V]

    tv_ref[...] = jnp.concatenate([touch, mu], axis=1).astype(tv_ref.dtype)


def pallas_obs_out(x, params, *, hw, C, cps, r, L, H, V, Td):
    B = x.shape[0]
    return pl.pallas_call(
        functools.partial(_obs_out_kernel, hw=hw, C=C, cps=cps, r=r, L=L, H=H, V=V, Td=Td),
        out_shape=(
            jax.ShapeDtypeStruct((B, cps * hw, r * r * hw), jnp.float32),   # vision (pre-reshaped)
            jax.ShapeDtypeStruct((B, Td + 2 * L * V), jnp.float32),         # [touch | mu_cmd | mu_rep]
        ),
        in_specs=[VMEM] * 5,
        out_specs=(VMEM, VMEM),
    )(x, params["w_big"], params["affine"], params["conv_slab"], params["gru_slab"])


# ---------------------------- parameter init ----------------------------------
def init_params(args):
    rng = np.random.default_rng(0)

    def nrm(*shape, s=0.05):
        return (rng.standard_normal(shape) * s).astype(np.float32)

    Din = args.h_w_wheels_joints_size
    H = args.hidden_size
    hw = args.image_size // args.divisions
    r = args.divisions
    L = args.max_voice_len
    V = args.voice_shape
    Td = args.touch_shape + args.joint_aspects
    C = H
    Cout = 4 * (1 if args.divisions == 1 else 2 ** args.divisions)
    cps = Cout // (r * r)
    eps = 1e-5
    alpha0 = np.float32(0.25)          # nn.PReLU() init value (per-module)

    # ------------- base weights in PyTorch layouts -------------
    vis_feat = C * hw * hw
    vis_w_pt = nrm(vis_feat, Din)                      # Linear.weight, out order (c,h,w)
    vis_b_pt = nrm(vis_feat)
    bn2_gamma = 1.0 + 0.01 * np.arange(C, dtype=np.float32)
    bn2_beta = 0.01 * np.arange(C, dtype=np.float32)
    bn2_mean = np.zeros(C, np.float32)                 # eval-mode running stats (synthetic)
    bn2_var = np.ones(C, np.float32)
    conv_w_pt = nrm(Cout, C, 3, 3)                     # Conv2d.weight
    conv_b_pt = nrm(Cout)
    touch_w_pt = nrm(Td, Din)
    touch_b_pt = nrm(Td)

    heads = []
    for _ in range(2):                                 # [command, report]
        heads.append(dict(
            a_w=nrm(L * H, Din), a_b=nrm(L * H),
            bn_gamma=1.0 + 0.01 * np.arange(L * H, dtype=np.float32),
            bn_beta=-0.01 * np.arange(L * H, dtype=np.float32),
            bn_mean=np.zeros(L * H, np.float32), bn_var=np.ones(L * H, np.float32),
            w_ih=nrm(3 * H, H), w_hh=nrm(3 * H, H),
            b_ih=nrm(3 * H), b_hh=nrm(3 * H),
            mu_w=nrm(V, H), mu_b=nrm(V),
        ))

    # ------------- pack: one big x-matmul weight + affine/PReLU slab -------------
    # vision Linear columns permuted (c,h,w) -> (h,w,c) so the matmul emits NHWC rows
    vis_w_hwc = vis_w_pt.reshape(C, hw, hw, Din).transpose(1, 2, 0, 3).reshape(vis_feat, Din)
    vis_b_hwc = vis_b_pt.reshape(C, hw, hw).transpose(1, 2, 0).reshape(vis_feat)
    vis_scale_c = bn2_gamma / np.sqrt(bn2_var + eps)
    vis_scale = np.tile(vis_scale_c, hw * hw)
    vis_shift = np.tile(bn2_beta - bn2_mean * vis_scale_c, hw * hw) + vis_b_hwc * vis_scale

    def head_affine(hd):
        s = hd["bn_gamma"] / np.sqrt(hd["bn_var"] + eps)
        return s, hd["bn_beta"] - hd["bn_mean"] * s + hd["a_b"] * s

    NX = vis_feat + Td + 2 * L * H
    w_big = np.zeros((Din, NX), np.float32)
    w_big[:, :vis_feat] = vis_w_hwc.T
    w_big[:, vis_feat:vis_feat + Td] = touch_w_pt.T
    w_big[:, vis_feat + Td:vis_feat + Td + L * H] = heads[0]["a_w"].T
    w_big[:, vis_feat + Td + L * H:] = heads[1]["a_w"].T

    s0, sh0 = head_affine(heads[0])
    s1, sh1 = head_affine(heads[1])
    scale_all = np.concatenate([vis_scale, np.ones(Td, np.float32), s0, s1])
    shift_all = np.concatenate([vis_shift, touch_b_pt, sh0, sh1])
    alpha_all = np.concatenate([np.full(vis_feat, alpha0, np.float32),
                                np.ones(Td, np.float32),                 # identity PReLU (tanh head)
                                np.full(2 * L * H, alpha0, np.float32)])
    affine = np.stack([scale_all, shift_all, alpha_all])                 # (3, NX)

    # ------------- conv as 3 block-banded matmuls with pixel-shuffled columns -------------
    kw = (hw + 2) * C
    conv_slab = np.zeros((3 * kw + 1, hw * Cout), np.float32)
    for ky in range(3):
        M = conv_slab[ky * kw:(ky + 1) * kw]
        for w in range(hw):
            for kx in range(3):
                wp = w + kx                        # padded-width input index
                for ci in range(C):
                    for c in range(cps):
                        for i in range(r):
                            for j in range(r):
                                co = c * (r * r) + i * r + j
                                col = c * (r * r * hw) + i * (r * hw) + w * r + j
                                M[wp * C + ci, col] = conv_w_pt[co, ci, ky, kx]
    brow = conv_slab[3 * kw]
    for w in range(hw):
        for c in range(cps):
            for i in range(r):
                for j in range(r):
                    brow[c * (r * r * hw) + i * (r * hw) + w * r + j] = conv_b_pt[c * (r * r) + i * r + j]

    # ------------- GRU slab: both heads folded into lanes, block-diagonal weights -------------
    G3 = 3 * 2 * H                                   # combined gate width per timestep
    NW = 2 * L * 3 * H
    WI0, WH0 = 0, 2 * L * H
    MU0 = WH0 + 2 * H
    BI, BH, MB = MU0 + 2 * L * H, MU0 + 2 * L * H + 1, MU0 + 2 * L * H + 2
    gru_slab = np.zeros((MB + 1, NW), np.float32)
    for hd in range(2):
        w_ih, w_hh = heads[hd]["w_ih"], heads[hd]["w_hh"]
        b_ih, b_hh = heads[hd]["b_ih"], heads[hd]["b_hh"]
        mu_w, mu_b = heads[hd]["mu_w"], heads[hd]["mu_b"]
        for g in range(3):
            for uo in range(H):
                gru_slab[BH, g * 2 * H + hd * H + uo] = b_hh[g * H + uo]
                for ui in range(H):
                    gru_slab[WH0 + hd * H + ui, g * 2 * H + hd * H + uo] = w_hh[g * H + uo, ui]
                for t in range(L):
                    gru_slab[BI, t * G3 + g * 2 * H + hd * H + uo] = b_ih[g * H + uo]
                    for ui in range(H):
                        gru_slab[WI0 + hd * L * H + t * H + ui,
                                 t * G3 + g * 2 * H + hd * H + uo] = w_ih[g * H + uo, ui]
        for t in range(L):
            for v in range(V):
                gru_slab[MB, hd * L * V + t * V + v] = mu_b[v]
                for ui in range(H):
                    gru_slab[MU0 + t * 2 * H + hd * H + ui, hd * L * V + t * V + v] = mu_w[v, ui]

    return dict(w_big=jnp.asarray(w_big), affine=jnp.asarray(affine),
                conv_slab=jnp.asarray(conv_slab), gru_slab=jnp.asarray(gru_slab))


# ------------------------------ forward pass -----------------------------------
def obs_out_forward(params, h_w_wheels_joints, *, args):
    E, S, Din = h_w_wheels_joints.shape
    B = E * S
    x = h_w_wheels_joints.reshape(B, Din).astype(jnp.float32)

    C = args.hidden_size
    hw = args.image_size // args.divisions
    r = args.divisions
    Cout = 4 * (1 if args.divisions == 1 else 2 ** args.divisions)
    cps = Cout // (r * r)
    L, V = args.max_voice_len, args.voice_shape
    Td = args.touch_shape + args.joint_aspects

    vis, tv = pallas_obs_out(x, params, hw=hw, C=C, cps=cps, r=r, L=L, H=C, V=V, Td=Td)

    # vision slab is already pixel-shuffled; only free reshapes remain
    vision_pred = vis.reshape(E, S, cps, hw * r, hw * r)
    touch_pred = tv[:, :Td].reshape(E, S, Td)
    command_voice_pred = tv[:, Td:Td + L * V].reshape(E, S, L, V)
    report_voice_pred = tv[:, Td + L * V:].reshape(E, S, L, V)
    return vision_pred, touch_pred, command_voice_pred, report_voice_pred


# ----------------------------------- main ---------------------------------------
if __name__ == "__main__":
    args = Args()
    params = init_params(args)

    key = jax.random.PRNGKey(0)
    episodes, steps = 2, 3
    h = jax.random.normal(key, (episodes, steps, args.h_w_wheels_joints_size), jnp.float32)

    fwd = jax.jit(functools.partial(obs_out_forward, args=args))
    vision, touch, cmd, rep = fwd(params, h)
    jax.block_until_ready((vision, touch, cmd, rep))

    assert vision.shape == (episodes, steps, 4, args.image_size, args.image_size)
    assert touch.shape == (episodes, steps, args.touch_shape + args.joint_aspects)
    assert cmd.shape == (episodes, steps, args.max_voice_len, args.voice_shape)
    assert rep.shape == (episodes, steps, args.max_voice_len, args.voice_shape)
    assert bool(jnp.all(jnp.isfinite(vision))) and bool(jnp.all(jnp.isfinite(touch)))
    assert bool(jnp.all(jnp.isfinite(cmd))) and bool(jnp.all(jnp.isfinite(rep)))

    print("KERNEL_OK")
</pallas_src>

<mosaic_0001>
module attributes {stable_mosaic.version = 11 : i64} {
  func.func @_obs_out_kernel(%arg0: memref<6x32xf32, #tpu.memory_space<vmem>>, %arg1: memref<32x584xf32, #tpu.memory_space<vmem>>, %arg2: memref<3x584xf32, #tpu.memory_space<vmem>>, %arg3: memref<241x128xf32, #tpu.memory_space<vmem>>, %arg4: memref<147x192xf32, #tpu.memory_space<vmem>>, %arg5: memref<6x32x32xf32, #tpu.memory_space<vmem>>, %arg6: memref<6x48xf32, #tpu.memory_space<vmem>>) attributes {dimension_semantics = [], scalar_prefetch = 0 : i64, scratch_operands = 0 : i64, tpu.core_type = #tpu.core_type<tc>} {
    %c0 = arith.constant 0 : index
    %c0_0 = arith.constant 0 : index
    %0 = vector.load %arg0[%c0, %c0_0] : memref<6x32xf32, #tpu.memory_space<vmem>>, vector<6x32xf32>
    %c0_1 = arith.constant 0 : index
    %c0_2 = arith.constant 0 : index
    %1 = vector.load %arg1[%c0_1, %c0_2] : memref<32x584xf32, #tpu.memory_space<vmem>>, vector<32x584xf32>
    %cst = arith.constant dense<0.000000e+00> : vector<6x584xf32>
    %2 = tpu.matmul %0, %1, %cst {dimension_numbers = #tpu.dot_dimension_numbers<[1], [0], [0], [1], [0, 0, 1, 1], [], []>} : vector<6x32xf32>, vector<32x584xf32>, vector<6x584xf32> -> vector<6x584xf32>
    %c0_3 = arith.constant 0 : index
    %c0_4 = arith.constant 0 : index
    %3 = vector.load %arg2[%c0_3, %c0_4] : memref<3x584xf32, #tpu.memory_space<vmem>>, vector<1x584xf32>
    %4 = vector.broadcast %3 : vector<1x584xf32> to vector<6x584xf32>
    %5 = arith.mulf %2, %4 : vector<6x584xf32>
    %c1 = arith.constant 1 : index
    %c0_5 = arith.constant 0 : index
    %6 = vector.load %arg2[%c1, %c0_5] : memref<3x584xf32, #tpu.memory_space<vmem>>, vector<1x584xf32>
    %7 = vector.broadcast %6 : vector<1x584xf32> to vector<6x584xf32>
    %8 = arith.addf %5, %7 : vector<6x584xf32>
    %cst_6 = arith.constant 0.000000e+00 : f32
    %9 = vector.broadcast %cst_6 : f32 to vector<6x584xf32>
    %10 = arith.cmpf oge, %8, %9 : vector<6x584xf32>
    %c2 = arith.constant 2 : index
    %c0_7 = arith.constant 0 : index
    %11 = vector.load %arg2[%c2, %c0_7] : memref<3x584xf32, #tpu.memory_space<vmem>>, vector<1x584xf32>
    %12 = vector.broadcast %11 : vector<1x584xf32> to vector<6x584xf32>
    %13 = arith.mulf %12, %8 : vector<6x584xf32>
    %14 = arith.select %10, %8, %13 : vector<6x584xi1>, vector<6x584xf32>
    %15 = vector.extract_strided_slice %14 {offsets = [0, 0], sizes = [6, 512], strides = [1, 1]} : vector<6x584xf32> to vector<6x512xf32>
    %16 = vector.shape_cast %15 : vector<6x512xf32> to vector<6x8x64xf32>
    %17 = vector.extract_strided_slice %16 {offsets = [0, 0, 8], sizes = [6, 8, 8], strides = [1, 1, 1]} : vector<6x8x64xf32> to vector<6x8x8xf32>
    %18 = vector.extract_strided_slice %16 {offsets = [0, 0, 48], sizes = [6, 8, 8], strides = [1, 1, 1]} : vector<6x8x64xf32> to vector<6x8x8xf32>
    %19 = tpu.concatenate %17, %16, %18 in 2 : vector<6x8x8xf32>, vector<6x8x64xf32>, vector<6x8x8xf32> -> vector<6x8x80xf32>
    %20 = vector.extract_strided_slice %19 {offsets = [0, 1, 0], sizes = [6, 1, 80], strides = [1, 1, 1]} : vector<6x8x80xf32> to vector<6x1x80xf32>
    %21 = vector.extract_strided_slice %19 {offsets = [0, 6, 0], sizes = [6, 1, 80], strides = [1, 1, 1]} : vector<6x8x80xf32> to vector<6x1x80xf32>
    %22 = tpu.concatenate %20, %19, %21 in 1 : vector<6x1x80xf32>, vector<6x8x80xf32>, vector<6x1x80xf32> -> vector<6x10x80xf32>
    %cst_8 = arith.constant 0.000000e+00 : f32
    %23 = vector.broadcast %cst_8 : f32 to vector<48x128xf32>
    %24 = vector.extract_strided_slice %22 {offsets = [0, 0, 0], sizes = [6, 8, 80], strides = [1, 1, 1]} : vector<6x10x80xf32> to vector<6x8x80xf32>
    %25 = vector.shape_cast %24 : vector<6x8x80xf32> to vector<48x80xf32>
    %c0_9 = arith.constant 0 : index
    %c0_10 = arith.constant 0 : index
    %26 = vector.load %arg3[%c0_9, %c0_10] : memref<241x128xf32, #tpu.memory_space<vmem>>, vector<80x128xf32>
    %cst_11 = arith.constant dense<0.000000e+00> : vector<48x128xf32>
    %27 = tpu.matmul %25, %26, %cst_11 {dimension_numbers = #tpu.dot_dimension_numbers<[1], [0], [0], [1], [0, 0, 1, 1], [], []>} : vector<48x80xf32>, vector<80x128xf32>, vector<48x128xf32> -> vector<48x128xf32>
    %28 = arith.addf %23, %27 : vector<48x128xf32>
    %29 = vector.extract_strided_slice %22 {offsets = [0, 1, 0], sizes = [6, 8, 80], strides = [1, 1, 1]} : vector<6x10x80xf32> to vector<6x8x80xf32>
    %30 = vector.shape_cast %29 : vector<6x8x80xf32> to vector<48x80xf32>
    %c80 = arith.constant 80 : index
    %c0_12 = arith.constant 0 : index
    %31 = vector.load %arg3[%c80, %c0_12] : memref<241x128xf32, #tpu.memory_space<vmem>>, vector<80x128xf32>
    %cst_13 = arith.constant dense<0.000000e+00> : vector<48x128xf32>
    %32 = tpu.matmul %30, %31, %cst_13 {dimension_numbers = #tpu.dot_dimension_numbers<[1], [0], [0], [1], [0, 0, 1, 1], [], []>} : vector<48x80xf32>, vector<80x128xf32>, vector<48x128xf32> -> vector<48x128xf32>
    %33 = arith.addf %28, %32 : vector<48x128xf32>
    %34 = vector.extract_strided_slice %22 {offsets = [0, 2, 0], sizes = [6, 8, 80], strides = [1, 1, 1]} : vector<6x10x80xf32> to vector<6x8x80xf32>
    %35 = vector.shape_cast %34 : vector<6x8x80xf32> to vector<48x80xf32>
    %c160 = arith.constant 160 : index
    %c0_14 = arith.constant 0 : index
    %36 = vector.load %arg3[%c160, %c0_14] : memref<241x128xf32, #tpu.memory_space<vmem>>, vector<80x128xf32>
    %cst_15 = arith.constant dense<0.000000e+00> : vector<48x128xf32>
    %37 = tpu.matmul %35, %36, %cst_15 {dimension_numbers = #tpu.dot_dimension_numbers<[1], [0], [0], [1], [0, 0, 1, 1], [], []>} : vector<48x80xf32>, vector<80x128xf32>, vector<48x128xf32> -> vector<48x128xf32>
    %38 = arith.addf %33, %37 : vector<48x128xf32>
    %c240 = arith.constant 240 : index
    %c0_16 = arith.constant 0 : index
    %39 = vector.load %arg3[%c240, %c0_16] : memref<241x128xf32, #tpu.memory_space<vmem>>, vector<1x128xf32>
    %40 = vector.broadcast %39 : vector<1x128xf32> to vector<48x128xf32>
    %41 = arith.addf %38, %40 : vector<48x128xf32>
    %42 = math.tanh %41 : vector<48x128xf32>
    %cst_17 = arith.constant 1.000000e+00 : f32
    %43 = vector.broadcast %cst_17 : f32 to vector<48x128xf32>
    %44 = arith.addf %42, %43 : vector<48x128xf32>
    %cst_18 = arith.constant 5.000000e-01 : f32
    %45 = vector.broadcast %cst_18 : f32 to vector<48x128xf32>
    %46 = arith.mulf %44, %45 : vector<48x128xf32>
    %47 = vector.extract_strided_slice %46 {offsets = [0, 0], sizes = [48, 32], strides = [1, 1]} : vector<48x128xf32> to vector<48x32xf32>
    %48 = vector.shape_cast %47 : vector<48x32xf32> to vector<6x8x32xf32>
    %49 = vector.extract_strided_slice %46 {offsets = [0, 32], sizes = [48, 32], strides = [1, 1]} : vector<48x128xf32> to vector<48x32xf32>
    %50 = vector.shape_cast %49 : vector<48x32xf32> to vector<6x8x32xf32>
    %51 = vector.extract_strided_slice %46 {offsets = [0, 64], sizes = [48, 32], strides = [1, 1]} : vector<48x128xf32> to vector<48x32xf32>
    %52 = vector.shape_cast %51 : vector<48x32xf32> to vector<6x8x32xf32>
    %53 = vector.extract_strided_slice %46 {offsets = [0, 96], sizes = [48, 32], strides = [1, 1]} : vector<48x128xf32> to vector<48x32xf32>
    %54 = vector.shape_cast %53 : vector<48x32xf32> to vector<6x8x32xf32>
    %55 = tpu.concatenate %48, %50, %52, %54 in 1 : vector<6x8x32xf32>, vector<6x8x32xf32>, vector<6x8x32xf32>, vector<6x8x32xf32> -> vector<6x32x32xf32>
    %c0_19 = arith.constant 0 : index
    %c0_20 = arith.constant 0 : index
    %c0_21 = arith.constant 0 : index
    %56 = vector.load %arg5[%c0_19, %c0_20, %c0_21] : memref<6x32x32xf32, #tpu.memory_space<vmem>>, vector<6x32x32xf32>
    tpu.vector_store %arg5[%c0_19, %c0_20, %c0_21], %55 {strides = array<i32>} : memref<6x32x32xf32, #tpu.memory_space<vmem>>, vector<6x32x32xf32>,
    %57 = vector.extract_strided_slice %14 {offsets = [0, 512], sizes = [6, 8], strides = [1, 1]} : vector<6x584xf32> to vector<6x8xf32>
    %58 = math.tanh %57 : vector<6x8xf32>
    %cst_22 = arith.constant 1.000000e+00 : f32
    %59 = vector.broadcast %cst_22 : f32 to vector<6x8xf32>
    %60 = arith.addf %58, %59 : vector<6x8xf32>
    %cst_23 = arith.constant 5.000000e-01 : f32
    %61 = vector.broadcast %cst_23 : f32 to vector<6x8xf32>
    %62 = arith.mulf %60, %61 : vector<6x8xf32>
    %63 = vector.extract_strided_slice %14 {offsets = [0, 520], sizes = [6, 64], strides = [1, 1]} : vector<6x584xf32> to vector<6x64xf32>
    %c0_24 = arith.constant 0 : index
    %c0_25 = arith.constant 0 : index
    %64 = vector.load %arg4[%c0_24, %c0_25] : memref<147x192xf32, #tpu.memory_space<vmem>>, vector<64x192xf32>
    %cst_26 = arith.constant dense<0.000000e+00> : vector<6x192xf32>
    %65 = tpu.matmul %63, %64, %cst_26 {dimension_numbers = #tpu.dot_dimension_numbers<[1], [0], [0], [1], [0, 0, 1, 1], [], []>} : vector<6x64xf32>, vector<64x192xf32>, vector<6x192xf32> -> vector<6x192xf32>
    %c144 = arith.constant 144 : index
    %c0_27 = arith.constant 0 : index
    %66 = vector.load %arg4[%c144, %c0_27] : memref<147x192xf32, #tpu.memory_space<vmem>>, vector<1x192xf32>
    %67 = vector.broadcast %66 : vector<1x192xf32> to vector<6x192xf32>
    %68 = arith.addf %65, %67 : vector<6x192xf32>
    %c64 = arith.constant 64 : index
    %c0_28 = arith.constant 0 : index
    %69 = vector.load %arg4[%c64, %c0_28] : memref<147x192xf32, #tpu.memory_space<vmem>>, vector<16x48xf32>
    %c145 = arith.constant 145 : index
    %c0_29 = arith.constant 0 : index
    %70 = vector.load %arg4[%c145, %c0_29] : memref<147x192xf32, #tpu.memory_space<vmem>>, vector<1x48xf32>
    %cst_30 = arith.constant 0.000000e+00 : f32
    %71 = vector.broadcast %cst_30 : f32 to vector<6x16xf32>
    %cst_31 = arith.constant dense<0.000000e+00> : vector<6x48xf32>
    %72 = tpu.matmul %71, %69, %cst_31 {dimension_numbers = #tpu.dot_dimension_numbers<[1], [0], [0], [1], [0, 0, 1, 1], [], []>} : vector<6x16xf32>, vector<16x48xf32>, vector<6x48xf32> -> vector<6x48xf32>
    %73 = vector.broadcast %70 : vector<1x48xf32> to vector<6x48xf32>
    %74 = arith.addf %72, %73 : vector<6x48xf32>
    %75 = vector.extract_strided_slice %68 {offsets = [0, 0], sizes = [6, 48], strides = [1, 1]} : vector<6x192xf32> to vector<6x48xf32>
    %76 = vector.extract_strided_slice %75 {offsets = [0, 0], sizes = [6, 16], strides = [1, 1]} : vector<6x48xf32> to vector<6x16xf32>
    %77 = vector.extract_strided_slice %74 {offsets = [0, 0], sizes = [6, 16], strides = [1, 1]} : vector<6x48xf32> to vector<6x16xf32>
    %78 = arith.addf %76, %77 : vector<6x16xf32>
    %79 = arith.negf %78 : vector<6x16xf32>
    %80 = math.exp %79 : vector<6x16xf32>
    %cst_32 = arith.constant 1.000000e+00 : f32
    %81 = vector.broadcast %cst_32 : f32 to vector<6x16xf32>
    %82 = arith.addf %81, %80 : vector<6x16xf32>
    %83 = arith.divf %81, %82 : vector<6x16xf32>
    %84 = vector.extract_strided_slice %75 {offsets = [0, 16], sizes = [6, 16], strides = [1, 1]} : vector<6x48xf32> to vector<6x16xf32>
    %85 = vector.extract_strided_slice %74 {offsets = [0, 16], sizes = [6, 16], strides = [1, 1]} : vector<6x48xf32> to vector<6x16xf32>
    %86 = arith.addf %84, %85 : vector<6x16xf32>
    %87 = arith.negf %86 : vector<6x16xf32>
    %88 = math.exp %87 : vector<6x16xf32>
    %cst_33 = arith.constant 1.000000e+00 : f32
    %89 = vector.broadcast %cst_33 : f32 to vector<6x16xf32>
    %90 = arith.addf %89, %88 : vector<6x16xf32>
    %91 = arith.divf %89, %90 : vector<6x16xf32>
    %92 = vector.extract_strided_slice %75 {offsets = [0, 32], sizes = [6, 16], strides = [1, 1]} : vector<6x48xf32> to vector<6x16xf32>
    %93 = vector.extract_strided_slice %74 {offsets = [0, 32], sizes = [6, 16], strides = [1, 1]} : vector<6x48xf32> to vector<6x16xf32>
    %94 = arith.mulf %83, %93 : vector<6x16xf32>
    %95 = arith.addf %92, %94 : vector<6x16xf32>
    %96 = math.tanh %95 : vector<6x16xf32>
    %cst_34 = arith.constant 1.000000e+00 : f32
    %97 = vector.broadcast %cst_34 : f32 to vector<6x16xf32>
    %98 = arith.subf %97, %91 : vector<6x16xf32>
    %99 = arith.mulf %98, %96 : vector<6x16xf32>
    %100 = arith.mulf %91, %71 : vector<6x16xf32>
    %101 = arith.addf %99, %100 : vector<6x16xf32>
    %cst_35 = arith.constant dense<0.000000e+00> : vector<6x48xf32>
    %102 = tpu.matmul %101, %69, %cst_35 {dimension_numbers = #tpu.dot_dimension_numbers<[1], [0], [0], [1], [0, 0, 1, 1], [], []>} : vector<6x16xf32>, vector<16x48xf32>, vector<6x48xf32> -> vector<6x48xf32>
    %103 = vector.broadcast %70 : vector<1x48xf32> to vector<6x48xf32>
    %104 = arith.addf %102, %103 : vector<6x48xf32>
    %105 = vector.extract_strided_slice %68 {offsets = [0, 48], sizes = [6, 48], strides = [1, 1]} : vector<6x192xf32> to vector<6x48xf32>
    %106 = vector.extract_strided_slice %105 {offsets = [0, 0], sizes = [6, 16], strides = [1, 1]} : vector<6x48xf32> to vector<6x16xf32>
    %107 = vector.extract_strided_slice %104 {offsets = [0, 0], sizes = [6, 16], strides = [1, 1]} : vector<6x48xf32> to vector<6x16xf32>
    %108 = arith.addf %106, %107 : vector<6x16xf32>
    %109 = arith.negf %108 : vector<6x16xf32>
    %110 = math.exp %109 : vector<6x16xf32>
    %cst_36 = arith.constant 1.000000e+00 : f32
    %111 = vector.broadcast %cst_36 : f32 to vector<6x16xf32>
    %112 = arith.addf %111, %110 : vector<6x16xf32>
    %113 = arith.divf %111, %112 : vector<6x16xf32>
    %114 = vector.extract_strided_slice %105 {offsets = [0, 16], sizes = [6, 16], strides = [1, 1]} : vector<6x48xf32> to vector<6x16xf32>
    %115 = vector.extract_strided_slice %104 {offsets = [0, 16], sizes = [6, 16], strides = [1, 1]} : vector<6x48xf32> to vector<6x16xf32>
    %116 = arith.addf %114, %115 : vector<6x16xf32>
    %117 = arith.negf %116 : vector<6x16xf32>
    %118 = math.exp %117 : vector<6x16xf32>
    %cst_37 = arith.constant 1.000000e+00 : f32
    %119 = vector.broadcast %cst_37 : f32 to vector<6x16xf32>
    %120 = arith.addf %119, %118 : vector<6x16xf32>
    %121 = arith.divf %119, %120 : vector<6x16xf32>
    %122 = vector.extract_strided_slice %105 {offsets = [0, 32], sizes = [6, 16], strides = [1, 1]} : vector<6x48xf32> to vector<6x16xf32>
    %123 = vector.extract_strided_slice %104 {offsets = [0, 32], sizes = [6, 16], strides = [1, 1]} : vector<6x48xf32> to vector<6x16xf32>
    %124 = arith.mulf %113, %123 : vector<6x16xf32>
    %125 = arith.addf %122, %124 : vector<6x16xf32>
    %126 = math.tanh %125 : vector<6x16xf32>
    %cst_38 = arith.constant 1.000000e+00 : f32
    %127 = vector.broadcast %cst_38 : f32 to vector<6x16xf32>
    %128 = arith.subf %127, %121 : vector<6x16xf32>
    %129 = arith.mulf %128, %126 : vector<6x16xf32>
    %130 = arith.mulf %121, %101 : vector<6x16xf32>
    %131 = arith.addf %129, %130 : vector<6x16xf32>
    %cst_39 = arith.constant dense<0.000000e+00> : vector<6x48xf32>
    %132 = tpu.matmul %131, %69, %cst_39 {dimension_numbers = #tpu.dot_dimension_numbers<[1], [0], [0], [1], [0, 0, 1, 1], [], []>} : vector<6x16xf32>, vector<16x48xf32>, vector<6x48xf32> -> vector<6x48xf32>
    %133 = vector.broadcast %70 : vector<1x48xf32> to vector<6x48xf32>
    %134 = arith.addf %132, %133 : vector<6x48xf32>
    %135 = vector.extract_strided_slice %68 {offsets = [0, 96], sizes = [6, 48], strides = [1, 1]} : vector<6x192xf32> to vector<6x48xf32>
    %136 = vector.extract_strided_slice %135 {offsets = [0, 0], sizes = [6, 16], strides = [1, 1]} : vector<6x48xf32> to vector<6x16xf32>
    %137 = vector.extract_strided_slice %134 {offsets = [0, 0], sizes = [6, 16], strides = [1, 1]} : vector<6x48xf32> to vector<6x16xf32>
    %138 = arith.addf %136, %137 : vector<6x16xf32>
    %139 = arith.negf %138 : vector<6x16xf32>
    %140 = math.exp %139 : vector<6x16xf32>
    %cst_40 = arith.constant 1.000000e+00 : f32
    %141 = vector.broadcast %cst_40 : f32 to vector<6x16xf32>
    %142 = arith.addf %141, %140 : vector<6x16xf32>
    %143 = arith.divf %141, %142 : vector<6x16xf32>
    %144 = vector.extract_strided_slice %135 {offsets = [0, 16], sizes = [6, 16], strides = [1, 1]} : vector<6x48xf32> to vector<6x16xf32>
    %145 = vector.extract_strided_slice %134 {offsets = [0, 16], sizes = [6, 16], strides = [1, 1]} : vector<6x48xf32> to vector<6x16xf32>
    %146 = arith.addf %144, %145 : vector<6x16xf32>
    %147 = arith.negf %146 : vector<6x16xf32>
    %148 = math.exp %147 : vector<6x16xf32>
    %cst_41 = arith.constant 1.000000e+00 : f32
    %149 = vector.broadcast %cst_41 : f32 to vector<6x16xf32>
    %150 = arith.addf %149, %148 : vector<6x16xf32>
    %151 = arith.divf %149, %150 : vector<6x16xf32>
    %152 = vector.extract_strided_slice %135 {offsets = [0, 32], sizes = [6, 16], strides = [1, 1]} : vector<6x48xf32> to vector<6x16xf32>
    %153 = vector.extract_strided_slice %134 {offsets = [0, 32], sizes = [6, 16], strides = [1, 1]} : vector<6x48xf32> to vector<6x16xf32>
    %154 = arith.mulf %143, %153 : vector<6x16xf32>
    %155 = arith.addf %152, %154 : vector<6x16xf32>
    %156 = math.tanh %155 : vector<6x16xf32>
    %cst_42 = arith.constant 1.000000e+00 : f32
    %157 = vector.broadcast %cst_42 : f32 to vector<6x16xf32>
    %158 = arith.subf %157, %151 : vector<6x16xf32>
    %159 = arith.mulf %158, %156 : vector<6x16xf32>
    %160 = arith.mulf %151, %131 : vector<6x16xf32>
    %161 = arith.addf %159, %160 : vector<6x16xf32>
    %cst_43 = arith.constant dense<0.000000e+00> : vector<6x48xf32>
    %162 = tpu.matmul %161, %69, %cst_43 {dimension_numbers = #tpu.dot_dimension_numbers<[1], [0], [0], [1], [0, 0, 1, 1], [], []>} : vector<6x16xf32>, vector<16x48xf32>, vector<6x48xf32> -> vector<6x48xf32>
    %163 = vector.broadcast %70 : vector<1x48xf32> to vector<6x48xf32>
    %164 = arith.addf %162, %163 : vector<6x48xf32>
    %165 = vector.extract_strided_slice %68 {offsets = [0, 144], sizes = [6, 48], strides = [1, 1]} : vector<6x192xf32> to vector<6x48xf32>
    %166 = vector.extract_strided_slice %165 {offsets = [0, 0], sizes = [6, 16], strides = [1, 1]} : vector<6x48xf32> to vector<6x16xf32>
    %167 = vector.extract_strided_slice %164 {offsets = [0, 0], sizes = [6, 16], strides = [1, 1]} : vector<6x48xf32> to vector<6x16xf32>
    %168 = arith.addf %166, %167 : vector<6x16xf32>
    %169 = arith.negf %168 : vector<6x16xf32>
    %170 = math.exp %169 : vector<6x16xf32>
    %cst_44 = arith.constant 1.000000e+00 : f32
    %171 = vector.broadcast %cst_44 : f32 to vector<6x16xf32>
    %172 = arith.addf %171, %170 : vector<6x16xf32>
    %173 = arith.divf %171, %172 : vector<6x16xf32>
    %174 = vector.extract_strided_slice %165 {offsets = [0, 16], sizes = [6, 16], strides = [1, 1]} : vector<6x48xf32> to vector<6x16xf32>
    %175 = vector.extract_strided_slice %164 {offsets = [0, 16], sizes = [6, 16], strides = [1, 1]} : vector<6x48xf32> to vector<6x16xf32>
    %176 = arith.addf %174, %175 : vector<6x16xf32>
    %177 = arith.negf %176 : vector<6x16xf32>
    %178 = math.exp %177 : vector<6x16xf32>
    %cst_45 = arith.constant 1.000000e+00 : f32
    %179 = vector.broadcast %cst_45 : f32 to vector<6x16xf32>
    %180 = arith.addf %179, %178 : vector<6x16xf32>
    %181 = arith.divf %179, %180 : vector<6x16xf32>
    %182 = vector.extract_strided_slice %165 {offsets = [0, 32], sizes = [6, 16], strides = [1, 1]} : vector<6x48xf32> to vector<6x16xf32>
    %183 = vector.extract_strided_slice %164 {offsets = [0, 32], sizes = [6, 16], strides = [1, 1]} : vector<6x48xf32> to vector<6x16xf32>
    %184 = arith.mulf %173, %183 : vector<6x16xf32>
    %185 = arith.addf %182, %184 : vector<6x16xf32>
    %186 = math.tanh %185 : vector<6x16xf32>
    %cst_46 = arith.constant 1.000000e+00 : f32
    %187 = vector.broadcast %cst_46 : f32 to vector<6x16xf32>
    %188 = arith.subf %187, %181 : vector<6x16xf32>
    %189 = arith.mulf %188, %186 : vector<6x16xf32>
    %190 = arith.mulf %181, %161 : vector<6x16xf32>
    %191 = arith.addf %189, %190 : vector<6x16xf32>
    %192 = tpu.concatenate %101, %131, %161, %191 in 1 : vector<6x16xf32>, vector<6x16xf32>, vector<6x16xf32>, vector<6x16xf32> -> vector<6x64xf32>
    %c80_47 = arith.constant 80 : index
    %c0_48 = arith.constant 0 : index
    %193 = vector.load %arg4[%c80_47, %c0_48] : memref<147x192xf32, #tpu.memory_space<vmem>>, vector<64x40xf32>
    %cst_49 = arith.constant dense<0.000000e+00> : vector<6x40xf32>
    %194 = tpu.matmul %192, %193, %cst_49 {dimension_numbers = #tpu.dot_dimension_numbers<[1], [0], [0], [1], [0, 0, 1, 1], [], []>} : vector<6x64xf32>, vector<64x40xf32>, vector<6x40xf32> -> vector<6x40xf32>
    %c146 = arith.constant 146 : index
    %c0_50 = arith.constant 0 : index
    %195 = vector.load %arg4[%c146, %c0_50] : memref<147x192xf32, #tpu.memory_space<vmem>>, vector<1x40xf32>
    %196 = vector.broadcast %195 : vector<1x40xf32> to vector<6x40xf32>
    %197 = arith.addf %194, %196 : vector<6x40xf32>
    %198 = tpu.concatenate %62, %197 in 1 : vector<6x8xf32>, vector<6x40xf32> -> vector<6x48xf32>
    %c0_51 = arith.constant 0 : index
    %c0_52 = arith.constant 0 : index
    %199 = vector.load %arg6[%c0_51, %c0_52] : memref<6x48xf32, #tpu.memory_space<vmem>>, vector<6x48xf32>
    tpu.vector_store %arg6[%c0_51, %c0_52], %198 {strides = array<i32>} : memref<6x48xf32, #tpu.memory_space<vmem>>, vector<6x48xf32>,
    return
  }
}

</mosaic_0001>

<llo_original>
// kernel: obs_out_forward.1
$region0: #{obs_out_forward.1}
  #allocation0 [shape = 'u32[]', space=smem, size = 0x4, offset = 0x4, fixed_abs, tag = 'smem constant byte address 0x4 - core index']
  #allocation1 [shape = 'u32[72,128]{1,0:T(1,128)}', space=vmem, size = 0x9000, scoped, tag = 'internal scratch']
  %s0 = inlined_call_operand.vmem [shape: f32[6,32], index: 0, kind: input, shape index: {}]
  %s1 = inlined_call_operand.hbm [shape: f32[32,584], index: 1, kind: input, shape index: {}]
  %s2 = inlined_call_operand.vmem [shape: f32[3,584], index: 2, kind: input, shape index: {}]
  %s3 = inlined_call_operand.hbm [shape: f32[241,128], index: 3, kind: input, shape index: {}]
  %s4 = inlined_call_operand.hbm [shape: f32[147,192], index: 4, kind: input, shape index: {}]
  %s5 = inlined_call_operand.vmem [shape: f32[6,32,32], index: 5, kind: output, shape index: {0}]
  %s6 = inlined_call_operand.vmem [shape: f32[6,48], index: 6, kind: output, shape index: {1}]
  %7 = xla_tuple %s5, %s6
  %s8 = sld [smem:[#allocation0]]
  $region50: #{obs_out_forward.1} parent=0
    _
  %s10 = ssub.s32 1, %s8
  %s11 = scalar_select 0, %s10, %s8
  $region1: #{obs_out_forward.1} parent=0
    #allocation2 [shape = 'u8[81920]{0}', space=vmem, size = 0x14000, scoped, tag = 'input window, operand 1, single buffered']
    #allocation3 [shape = 's32[1]{0}', space=sflag, size = 0x4, scoped, tag = 'scoped memory for obs_out_forward.1']
    #allocation4 [shape = 'u8[126976]{0}', space=vmem, size = 0x1f000, scoped, tag = 'input window, operand 3, single buffered']
    #allocation5 [shape = 's32[1]{0}', space=sflag, size = 0x4, scoped, tag = 'scoped memory for obs_out_forward.1']
    #allocation6 [shape = 'u8[155648]{0}', space=vmem, size = 0x26000, scoped, tag = 'input window, operand 4, single buffered']
    %12 = vsyncpa [#allocation3], 0
    %13 = vsyncpa [#allocation5], 0
    // Predicated region
    $region2: #{obs_out_forward.1} parent=1 // pred_check
      _
    $region3: #{obs_out_forward.1} parent=1 // pred_check_branch
      %15 = sbr.rel (0) target = $region5
    $region4: #{obs_out_forward.1} parent=1 // pred_region
      _
    $region5: #{obs_out_forward.1} parent=1 // pred_fallthru
      _
    // Predicated region
    $region6: #{obs_out_forward.1} parent=1 // pred_check
      _
    $region7: #{obs_out_forward.1} parent=1 // pred_check_branch
      %17 = sbr.rel (0) target = $region9
    $region8: #{obs_out_forward.1} parent=1 // pred_region
      %19 = vsyncadd [#allocation3], 0
      %s20 = sshll.u32 %s1, 4
      %s21 = int_to_ptr.hbm [resolvable:$true] %s20
      %s22 = sshll.u32 [#allocation2], 4
      %s23 = int_to_ptr.vmem [resolvable:$true] %s22
      %28 = dma.hbm_to_vmem [thread:$0]  %s21, 2560, %s23, [#allocation3], 640, 640, 40
    $region9: #{obs_out_forward.1} parent=1 // pred_fallthru
      _
    // Predicated region
    $region10: #{obs_out_forward.1} parent=1 // pred_check
      _
    $region11: #{obs_out_forward.1} parent=1 // pred_check_branch
      %30 = sbr.rel (0) target = $region13
    $region12: #{obs_out_forward.1} parent=1 // pred_region
      _
    $region13: #{obs_out_forward.1} parent=1 // pred_fallthru
      _
    // Predicated region
    $region14: #{obs_out_forward.1} parent=1 // pred_check
      _
    $region15: #{obs_out_forward.1} parent=1 // pred_check_branch
      %32 = sbr.rel (0) target = $region17
    $region16: #{obs_out_forward.1} parent=1 // pred_region
      %34 = vsyncadd [#allocation5], 0
      %s35 = sshll.u32 %s3, 4
      %s36 = int_to_ptr.hbm [resolvable:$true] %s35
      %s37 = sshll.u32 [#allocation4], 4
      %s38 = int_to_ptr.vmem [resolvable:$true] %s37
      %43 = dma.hbm_to_vmem [thread:$0]  %s36, 3968, %s38, [#allocation5], 128, 128, 8
    $region17: #{obs_out_forward.1} parent=1 // pred_fallthru
      _
    // Predicated region
    $region18: #{obs_out_forward.1} parent=1 // pred_check
      _
    $region19: #{obs_out_forward.1} parent=1 // pred_check_branch
      %45 = sbr.rel (0) target = $region21
    $region20: #{obs_out_forward.1} parent=1 // pred_region
      %47 = vsyncadd [#allocation5], 0
      %s48 = sshll.u32 %s4, 4
      %s49 = int_to_ptr.hbm [resolvable:$true] %s48
      %s50 = sshll.u32 [#allocation6], 4
      %s51 = int_to_ptr.vmem [resolvable:$true] %s50
      %56 = dma.hbm_to_vmem [thread:$0]  %s49, 4864, %s51, [#allocation5], 256, 256, 16
    $region21: #{obs_out_forward.1} parent=1 // pred_fallthru
      _
    // Predicated region
    $region22: #{obs_out_forward.1} parent=1 // pred_check
      _
    $region23: #{obs_out_forward.1} parent=1 // pred_check_branch
      %58 = sbr.rel (0) target = $region25
    $region24: #{obs_out_forward.1} parent=1 // pred_region
      %60 = dma.done [#allocation3], 2560
    $region25: #{obs_out_forward.1} parent=1 // pred_fallthru
      _
    // Predicated region
    $region26: #{obs_out_forward.1} parent=1 // pred_check
      _
    $region27: #{obs_out_forward.1} parent=1 // pred_check_branch
      %62 = sbr.rel (0) target = $region29
    $region28: #{obs_out_forward.1} parent=1 // pred_region
      %64 = dma.done [#allocation5], 3968
    $region29: #{obs_out_forward.1} parent=1 // pred_fallthru
      _
    // Predicated region
    $region30: #{obs_out_forward.1} parent=1 // pred_check
      _
    $region31: #{obs_out_forward.1} parent=1 // pred_check_branch
      %66 = sbr.rel (0) target = $region33
    $region32: #{obs_out_forward.1} parent=1 // pred_region
      %68 = dma.done [#allocation5], 4864
    $region33: #{obs_out_forward.1} parent=1 // pred_fallthru
      _
    %v69 = vld [vmem:[%s0] sm:$0x3f]
    %v70 = vld [vmem:[#allocation2] sm:$0xff]
    %v71 = vld [vmem:[#allocation2 + $0x8] sm:$0xff]
    %v72 = vld [vmem:[#allocation2 + $0x10] sm:$0xff]
    %v73 = vld [vmem:[#allocation2 + $0x18] sm:$0xff]
    %v74 = vld [vmem:[#allocation2 + $0x20] sm:$0xff]
    %v75 = vld [vmem:[#allocation2 + $0x28] sm:$0xff]
    %v76 = vld [vmem:[#allocation2 + $0x30] sm:$0xff]
    %v77 = vld [vmem:[#allocation2 + $0x38] sm:$0xff]
    %v78 = vld [vmem:[#allocation2 + $0x40] sm:$0xff]
    %v79 = vld [vmem:[#allocation2 + $0x48] sm:$0xff]
    %v80 = vld [vmem:[#allocation2 + $0x50] sm:$0xff]
    %v81 = vld [vmem:[#allocation2 + $0x58] sm:$0xff]
    %v82 = vld [vmem:[#allocation2 + $0x60] sm:$0xff]
    %v83 = vld [vmem:[#allocation2 + $0x68] sm:$0xff]
    %v84 = vld [vmem:[#allocation2 + $0x70] sm:$0xff]
    %v85 = vld [vmem:[#allocation2 + $0x78] sm:$0xff]
    %v86 = vld [vmem:[#allocation2 + $0x80] sm:$0xff]
    %v87 = vld [vmem:[#allocation2 + $0x88] sm:$0xff]
    %v88 = vld [vmem:[#allocation2 + $0x90] sm:$0xff]
    %v89 = vld [vmem:[#allocation2 + $0x98] sm:$0xff]
    %vm90 = vcmask 261120
    %v92 = vsel %vm90, %v69, 0
    %94 = vmatpush.msra.mxu0 0.0
    %95 = vmatpush.msra.mxu0 0.0
    %96 = vmatpush.msra.mxu0 0.0
    %97 = vmatpush.msra.mxu0 0.0
    %98 = vmatpush.msra.mxu0 0.0
    %99 = vmatpush.msra.mxu0 0.0
    %100 = vmatpush.msra.mxu0 0.0
    %101 = vmatpush.msra.mxu0 0.0
    %102 = vmatpush.msra.mxu0 0.0
    %103 = vmatpush.msra.mxu0 0.0
    %104 = vmatpush.msra.mxu0 0.0
    %105 = vmatpush.msra.mxu0 0.0
    %106 = vmatpush.msra.mxu0 %v85
    %107 = vmatpush.msra.mxu0 %v80
    %108 = vmatpush.msra.mxu0 %v75
    %109 = vmatpush.msra.mxu0 %v70
    %110 = vmatmul.f32.gmra.mxu0 %v92
    %v111 = vpop.f32.mrf.mxu0
    %v112 = vadd.f32 0.0, %v111
    %113 = vdwg.mxu0
    %114 = vmatpush.msra.mxu0 0.0
    %115 = vmatpush.msra.mxu0 0.0
    %116 = vmatpush.msra.mxu0 0.0
    %117 = vmatpush.msra.mxu0 0.0
    %118 = vmatpush.msra.mxu0 0.0
    %119 = vmatpush.msra.mxu0 0.0
    %120 = vmatpush.msra.mxu0 0.0
    %121 = vmatpush.msra.mxu0 0.0
    %122 = vmatpush.msra.mxu0 0.0
    %123 = vmatpush.msra.mxu0 0.0
    %124 = vmatpush.msra.mxu0 0.0
    %125 = vmatpush.msra.mxu0 0.0
    %126 = vmatpush.msra.mxu0 %v86
    %127 = vmatpush.msra.mxu0 %v81
    %128 = vmatpush.msra.mxu0 %v76
    %129 = vmatpush.msra.mxu0 %v71
    %130 = vmatmul.f32.gmra.mxu0 %v92
    %v131 = vpop.f32.mrf.mxu0
    %v132 = vadd.f32 0.0, %v131
    %133 = vdwg.mxu0
    %134 = vmatpush.msra.mxu0 0.0
    %135 = vmatpush.msra.mxu0 0.0
    %136 = vmatpush.msra.mxu0 0.0
    %137 = vmatpush.msra.mxu0 0.0
    %138 = vmatpush.msra.mxu0 0.0
    %139 = vmatpush.msra.mxu0 0.0
    %140 = vmatpush.msra.mxu0 0.0
    %141 = vmatpush.msra.mxu0 0.0
    %142 = vmatpush.msra.mxu0 0.0
    %143 = vmatpush.msra.mxu0 0.0
    %144 = vmatpush.msra.mxu0 0.0
    %145 = vmatpush.msra.mxu0 0.0
    %146 = vmatpush.msra.mxu0 %v87
    %147 = vmatpush.msra.mxu0 %v82
    %148 = vmatpush.msra.mxu0 %v77
    %149 = vmatpush.msra.mxu0 %v72
    %150 = vmatmul.f32.gmra.mxu0 %v92
    %v151 = vpop.f32.mrf.mxu0
    %v152 = vadd.f32 0.0, %v151
    %153 = vdwg.mxu0
    %154 = vmatpush.msra.mxu0 0.0
    %155 = vmatpush.msra.mxu0 0.0
    %156 = vmatpush.msra.mxu0 0.0
    %157 = vmatpush.msra.mxu0 0.0
    %158 = vmatpush.msra.mxu0 0.0
    %159 = vmatpush.msra.mxu0 0.0
    %160 = vmatpush.msra.mxu0 0.0
    %161 = vmatpush.msra.mxu0 0.0
    %162 = vmatpush.msra.mxu0 0.0
    %163 = vmatpush.msra.mxu0 0.0
    %164 = vmatpush.msra.mxu0 0.0
    %165 = vmatpush.msra.mxu0 0.0
    %166 = vmatpush.msra.mxu0 %v88
    %167 = vmatpush.msra.mxu0 %v83
    %168 = vmatpush.msra.mxu0 %v78
    %169 = vmatpush.msra.mxu0 %v73
    %170 = vmatmul.f32.gmra.mxu0 %v92
    %v171 = vpop.f32.mrf.mxu0
    %v172 = vadd.f32 0.0, %v171
    %173 = vdwg.mxu0
    %174 = vmatpush.msra.mxu0 0.0
    %175 = vmatpush.msra.mxu0 0.0
    %176 = vmatpush.msra.mxu0 0.0
    %177 = vmatpush.msra.mxu0 0.0
    %178 = vmatpush.msra.mxu0 0.0
    %179 = vmatpush.msra.mxu0 0.0
    %180 = vmatpush.msra.mxu0 0.0
    %181 = vmatpush.msra.mxu0 0.0
    %182 = vmatpush.msra.mxu0 0.0
    %183 = vmatpush.msra.mxu0 0.0
    %184 = vmatpush.msra.mxu0 0.0
    %185 = vmatpush.msra.mxu0 0.0
    %186 = vmatpush.msra.mxu0 %v89
    %187 = vmatpush.msra.mxu0 %v84
    %188 = vmatpush.msra.mxu0 %v79
    %189 = vmatpush.msra.mxu0 %v74
    %190 = vmatmul.f32.gmra.mxu0 %v92
    %v191 = vpop.f32.mrf.mxu0
    %v192 = vadd.f32 0.0, %v191
    %193 = vdwg.mxu0
    %v194 = vld [vmem:[%s2] ss:$4 sm:$0x1f]
    %v196 = vperm.slane %v194, 0
    %v197 = vperm.slane %v194, 1
    %v198 = vperm.slane %v194, 2
    %v199 = vperm.slane %v194, 3
    %v200 = vperm.slane %v194, 4
    %v206 = vmul.f32 %v112, %v196
    %v207 = vmul.f32 %v132, %v197
    %v208 = vmul.f32 %v152, %v198
    %v209 = vmul.f32 %v172, %v199
    %v210 = vmul.f32 %v192, %v200
    %s211 = scalar_lea.vmem %s2, 1
    %v212 = vld [vmem:[%s211] ss:$4 sm:$0x1f]
    %v214 = vperm.slane %v212, 0
    %v215 = vperm.slane %v212, 1
    %v216 = vperm.slane %v212, 2
    %v217 = vperm.slane %v212, 3
    %v218 = vperm.slane %v212, 4
    %v224 = vadd.f32 %v206, %v214
    %v225 = vadd.f32 %v207, %v215
    %v226 = vadd.f32 %v208, %v216
    %v227 = vadd.f32 %v209, %v217
    %v228 = vadd.f32 %v210, %v218
    %vm229 = vcmp.ge.f32.partialorder %v224, 0.0
    %vm230 = vcmp.ge.f32.partialorder %v225, 0.0
    %vm231 = vcmp.ge.f32.partialorder %v226, 0.0
    %vm232 = vcmp.ge.f32.partialorder %v227, 0.0
    %vm233 = vcmp.ge.f32.partialorder %v228, 0.0
    %s234 = scalar_lea.vmem %s2, 2
    %v235 = vld [vmem:[%s234] ss:$4 sm:$0x1f]
    %v237 = vperm.slane %v235, 0
    %v238 = vperm.slane %v235, 1
    %v239 = vperm.slane %v235, 2
    %v240 = vperm.slane %v235, 3
    %v241 = vperm.slane %v235, 4
    %v247 = vmul.f32 %v237, %v224
    %v248 = vmul.f32 %v238, %v225
    %v249 = vmul.f32 %v239, %v226
    %v250 = vmul.f32 %v240, %v227
    %v251 = vmul.f32 %v241, %v228
    %v252 = vsel %vm229, %v224, %v247
    %v253 = vsel %vm230, %v225, %v248
    %v254 = vsel %vm231, %v226, %v249
    %v255 = vsel %vm232, %v227, %v250
    %v256 = vsel %vm233, %v228, %v251
    %258 = vrot.lane.b32.xlu0 %v252, 64
    %v259 = vpop.permute.xlu0 %258
    %262 = vrot.lane.b32.xlu0 %v253, 64
    %v263 = vpop.permute.xlu0 %262
    %266 = vrot.lane.b32.xlu0 %v254, 64
    %v267 = vpop.permute.xlu0 %266
    %270 = vrot.lane.b32.xlu0 %v255, 64
    %v271 = vpop.permute.xlu0 %270
    %v273 = vrot.slane %v253, 4
    %vm274 = vcmask 1047556
    %v275 = vsel %vm274, %v273, %v252
    %v276 = vrot.slane %v252, 4
    %v277 = vsel %vm274, %v253, %v276
    %v279 = vunpack.c.l.s4 1983009808
    %v280 = vunpack.c.0.s8 %v279
    %v281 = vperm.slane %v275, %v280
    %v283 = vunpack.c.l.s4 1983009808
    %v284 = vunpack.c.0.s8 %v283
    %v285 = vperm.slane %v277, %v284
    %v286 = vrot.slane %v263, 4
    %v287 = vsel %vm274, %v286, %v259
    %v288 = vrot.slane %v259, 4
    %v289 = vsel %vm274, %v263, %v288
    %v291 = vunpack.c.l.s4 1983009808
    %v292 = vunpack.c.0.s8 %v291
    %v293 = vperm.slane %v287, %v292
    %v295 = vunpack.c.l.s4 1983009808
    %v296 = vunpack.c.0.s8 %v295
    %v297 = vperm.slane %v289, %v296
    %v298 = vrot.slane %v255, 4
    %v299 = vsel %vm274, %v298, %v254
    %v300 = vrot.slane %v254, 4
    %v301 = vsel %vm274, %v255, %v300
    %v303 = vunpack.c.l.s4 1983009808
    %v304 = vunpack.c.0.s8 %v303
    %v305 = vperm.slane %v299, %v304
    %v307 = vunpack.c.l.s4 1983009808
    %v308 = vunpack.c.0.s8 %v307
    %v309 = vperm.slane %v301, %v308
    %v310 = vrot.slane %v271, 4
    %v311 = vsel %vm274, %v310, %v267
    %v312 = vrot.slane %v267, 4
    %v313 = vsel %vm274, %v271, %v312
    %v315 = vunpack.c.l.s4 1983009808
    %v316 = vunpack.c.0.s8 %v315
    %v317 = vperm.slane %v311, %v316
    %v319 = vunpack.c.l.s4 1983009808
    %v320 = vunpack.c.0.s8 %v319
    %v321 = vperm.slane %v313, %v320
    %v322 = vrot.slane %v293, 4
    %v323 = vsel %vm274, %v322, %v281
    %v324 = vrot.slane %v281, 4
    %v325 = vsel %vm274, %v293, %v324
    %v327 = vunpack.c.l.s4 1934713408
    %v328 = vunpack.c.0.s8 %v327
    %v329 = vperm.slane %v323, %v328
    %v331 = vunpack.c.l.s4 1934713408
    %v332 = vunpack.c.0.s8 %v331
    %v333 = vperm.slane %v325, %v332
    %v334 = vrot.slane %v297, 4
    %v335 = vsel %vm274, %v334, %v285
    %v337 = vunpack.c.l.s4 1934713408
    %v338 = vunpack.c.0.s8 %v337
    %v339 = vperm.slane %v335, %v338
    %v340 = vrot.slane %v317, 4
    %v341 = vsel %vm274, %v340, %v305
    %v342 = vrot.slane %v305, 4
    %v343 = vsel %vm274, %v317, %v342
    %v345 = vunpack.c.l.s4 1934713408
    %v346 = vunpack.c.0.s8 %v345
    %v347 = vperm.slane %v341, %v346
    %v349 = vunpack.c.l.s4 1934713408
    %v350 = vunpack.c.0.s8 %v349
    %v351 = vperm.slane %v343, %v350
    %v352 = vrot.slane %v321, 4
    %v353 = vsel %vm274, %v352, %v309
    %v355 = vunpack.c.l.s4 1934713408
    %v356 = vunpack.c.0.s8 %v355
    %v357 = vperm.slane %v353, %v356
    %v358 = vrot.slane %v347, 4
    %v359 = vsel %vm274, %v358, %v329
    %v360 = vrot.slane %v329, 4
    %v361 = vsel %vm274, %v347, %v360
    %v362 = vrot.slane %v351, 4
    %v363 = vsel %vm274, %v362, %v333
    %v364 = vrot.slane %v333, 4
    %v365 = vsel %vm274, %v351, %v364
    %v366 = vrot.slane %v357, 4
    %v367 = vsel %vm274, %v366, %v339
    %v368 = vrot.slane %v339, 4
    %v369 = vsel %vm274, %v357, %v368
    %376 = vrot.lane.b32.xlu0 %v359, 120
    %v377 = vpop.permute.xlu0 %376
    %378 = vrot.lane.b32.xlu0 %v361, 120
    %v379 = vpop.permute.xlu0 %378
    %380 = vrot.lane.b32.xlu0 %v363, 120
    %v381 = vpop.permute.xlu0 %380
    %382 = vrot.lane.b32.xlu0 %v365, 120
    %v383 = vpop.permute.xlu0 %382
    %384 = vrot.lane.b32.xlu0 %v367, 120
    %v385 = vpop.permute.xlu0 %384
    %386 = vrot.lane.b32.xlu0 %v369, 120
    %v387 = vpop.permute.xlu0 %386
    %394 = vrot.lane.b32.xlu0 %v359, 8
    %v395 = vpop.permute.xlu0 %394
    %396 = vrot.lane.b32.xlu0 %v361, 8
    %v397 = vpop.permute.xlu0 %396
    %398 = vrot.lane.b32.xlu0 %v363, 8
    %v399 = vpop.permute.xlu0 %398
    %400 = vrot.lane.b32.xlu0 %v365, 8
    %v401 = vpop.permute.xlu0 %400
    %402 = vrot.lane.b32.xlu0 %v367, 8
    %v403 = vpop.permute.xlu0 %402
    %404 = vrot.lane.b32.xlu0 %v369, 8
    %v405 = vpop.permute.xlu0 %404
    %412 = vrot.lane.b32.xlu0 %v359, 24
    %v413 = vpop.permute.xlu0 %412
    %414 = vrot.lane.b32.xlu0 %v361, 24
    %v415 = vpop.permute.xlu0 %414
    %416 = vrot.lane.b32.xlu0 %v363, 24
    %v417 = vpop.permute.xlu0 %416
    %418 = vrot.lane.b32.xlu0 %v365, 24
    %v419 = vpop.permute.xlu0 %418
    %420 = vrot.lane.b32.xlu0 %v367, 24
    %v421 = vpop.permute.xlu0 %420
    %422 = vrot.lane.b32.xlu0 %v369, 24
    %v423 = vpop.permute.xlu0 %422
    %vm430 = vcmask 64512
    %v431 = vsel %vm430, %v377, %v395
    %v432 = vsel %vm430, %v379, %v397
    %v433 = vsel %vm430, %v381, %v399
    %v434 = vsel %vm430, %v383, %v401
    %v435 = vsel %vm430, %v385, %v403
    %v436 = vsel %vm430, %v387, %v405
    %vm437 = vcmask 588800
    %v438 = vsel %vm437, %v431, %v413
    %v439 = vsel %vm437, %v432, %v415
    %v440 = vsel %vm437, %v433, %v417
    %v441 = vsel %vm437, %v434, %v419
    %v442 = vsel %vm437, %v435, %v421
    %v443 = vsel %vm437, %v436, %v423
    %v450 = vrot.slane %v438, 1
    %v451 = vrot.slane %v439, 1
    %v452 = vrot.slane %v440, 1
    %v453 = vrot.slane %v441, 1
    %v454 = vrot.slane %v442, 1
    %v455 = vrot.slane %v443, 1
    %v462 = vrot.slane %v438, 7
    %v463 = vrot.slane %v439, 7
    %v464 = vrot.slane %v440, 7
    %v465 = vrot.slane %v441, 7
    %v466 = vrot.slane %v442, 7
    %v467 = vrot.slane %v443, 7
    %v474 = vrot.slane %v438, 5
    %v475 = vrot.slane %v439, 5
    %v476 = vrot.slane %v440, 5
    %v477 = vrot.slane %v441, 5
    %v478 = vrot.slane %v442, 5
    %v479 = vrot.slane %v443, 5
    %vm486 = vcmask 1040384
    %v487 = vsel %vm486, %v450, %v462
    %v488 = vsel %vm486, %v451, %v463
    %v489 = vsel %vm486, %v452, %v464
    %v490 = vsel %vm486, %v453, %v465
    %v491 = vsel %vm486, %v454, %v466
    %v492 = vsel %vm486, %v455, %v467
    %v493 = vsel %vm486, %v462, %v474
    %v494 = vsel %vm486, %v463, %v475
    %v495 = vsel %vm486, %v464, %v476
    %v496 = vsel %vm486, %v465, %v477
    %v497 = vsel %vm486, %v466, %v478
    %v498 = vsel %vm486, %v467, %v479
    %v499 = vld [vmem:[#allocation4] sm:$0xff]
    %v500 = vld [vmem:[#allocation4 + $0x8] sm:$0xff]
    %v501 = vld [vmem:[#allocation4 + $0x10] sm:$0xff]
    %v502 = vld [vmem:[#allocation4 + $0x18] sm:$0xff]
    %v503 = vld [vmem:[#allocation4 + $0x20] sm:$0xff]
    %v504 = vld [vmem:[#allocation4 + $0x28] sm:$0xff]
    %v505 = vld [vmem:[#allocation4 + $0x30] sm:$0xff]
    %v506 = vld [vmem:[#allocation4 + $0x38] sm:$0xff]
    %v507 = vld [vmem:[#allocation4 + $0x40] sm:$0xff]
    %v508 = vld [vmem:[#allocation4 + $0x48] sm:$0xff]
    %vm521 = vcmask 1046528
    %v522 = vrot.slane %v487, 1
    %v523 = vrot.slane %v493, 1
    %v524 = vsel %vm521, %v522, %v523
    %v525 = vrot.slane %v488, 1
    %v526 = vrot.slane %v494, 1
    %v527 = vsel %vm521, %v525, %v526
    %v528 = vrot.slane %v489, 1
    %v529 = vrot.slane %v495, 1
    %v530 = vsel %vm521, %v528, %v529
    %v531 = vrot.slane %v490, 1
    %v532 = vrot.slane %v496, 1
    %v533 = vsel %vm521, %v531, %v532
    %v534 = vrot.slane %v491, 1
    %v535 = vrot.slane %v497, 1
    %v536 = vsel %vm521, %v534, %v535
    %v537 = vrot.slane %v492, 1
    %v538 = vrot.slane %v498, 1
    %v539 = vsel %vm521, %v537, %v538
    %v540 = vld [vmem:[#allocation4 + $0x50] sm:$0xff]
    %v541 = vld [vmem:[#allocation4 + $0x58] sm:$0xff]
    %v542 = vld [vmem:[#allocation4 + $0x60] sm:$0xff]
    %v543 = vld [vmem:[#allocation4 + $0x68] sm:$0xff]
    %v544 = vld [vmem:[#allocation4 + $0x70] sm:$0xff]
    %v545 = vld [vmem:[#allocation4 + $0x78] sm:$0xff]
    %v546 = vld [vmem:[#allocation4 + $0x80] sm:$0xff]
    %v547 = vld [vmem:[#allocation4 + $0x88] sm:$0xff]
    %v548 = vld [vmem:[#allocation4 + $0x90] sm:$0xff]
    %v549 = vld [vmem:[#allocation4 + $0x98] sm:$0xff]
    %vm550 = vcmask 654336
    %v551 = vsel %vm550, %v524, 0
    %v553 = vsel %vm550, %v527, 0
    %v555 = vsel %vm550, %v530, 0
    %v557 = vsel %vm550, %v533, 0
    %v559 = vsel %vm550, %v536, 0
    %v561 = vsel %vm550, %v539, 0
    %563 = vmatpush.msra.mxu0 0.0
    %564 = vmatpush.msra.mxu0 0.0
    %565 = vmatpush.msra.mxu0 0.0
    %566 = vmatpush.msra.mxu0 0.0
    %567 = vmatpush.msra.mxu0 0.0
    %568 = vmatpush.msra.mxu0 0.0
    %569 = vmatpush.msra.mxu0 %v549
    %570 = vmatpush.msra.mxu0 %v548
    %571 = vmatpush.msra.mxu0 %v547
    %572 = vmatpush.msra.mxu0 %v546
    %573 = vmatpush.msra.mxu0 %v545
    %574 = vmatpush.msra.mxu0 %v544
    %575 = vmatpush.msra.mxu0 %v543
    %576 = vmatpush.msra.mxu0 %v542
    %577 = vmatpush.msra.mxu0 %v541
    %578 = vmatpush.msra.mxu0 %v540
    %579 = vmatmul.f32.gmra.mxu0 %v551
    %v580 = vpop.f32.mrf.mxu0
    %v581 = vadd.f32 0.0, %v580
    %582 = vmatmul.f32.gmra.mxu0 %v553
    %v583 = vpop.f32.mrf.mxu0
    %v584 = vadd.f32 0.0, %v583
    %585 = vmatmul.f32.gmra.mxu0 %v555
    %v586 = vpop.f32.mrf.mxu0
    %v587 = vadd.f32 0.0, %v586
    %588 = vmatmul.f32.gmra.mxu0 %v557
    %v589 = vpop.f32.mrf.mxu0
    %v590 = vadd.f32 0.0, %v589
    %591 = vmatmul.f32.gmra.mxu0 %v559
    %v592 = vpop.f32.mrf.mxu0
    %v593 = vadd.f32 0.0, %v592
    %594 = vmatmul.f32.gmra.mxu0 %v561
    %v595 = vpop.f32.mrf.mxu0
    %v596 = vadd.f32 0.0, %v595
    %597 = vdwg.mxu0
    %v598 = vsel %vm550, %v487, 0
    %v600 = vsel %vm550, %v488, 0
    %v602 = vsel %vm550, %v489, 0
    %v604 = vsel %vm550, %v490, 0
    %v606 = vsel %vm550, %v491, 0
    %v608 = vsel %vm550, %v492, 0
    %610 = vmatpush.msra.mxu0 0.0
    %611 = vmatpush.msra.mxu0 0.0
    %612 = vmatpush.msra.mxu0 0.0
    %613 = vmatpush.msra.mxu0 0.0
    %614 = vmatpush.msra.mxu0 0.0
    %615 = vmatpush.msra.mxu0 0.0
    %616 = vmatpush.msra.mxu0 %v508
    %617 = vmatpush.msra.mxu0 %v507
    %618 = vmatpush.msra.mxu0 %v506
    %619 = vmatpush.msra.mxu0 %v505
    %620 = vmatpush.msra.mxu0 %v504
    %621 = vmatpush.msra.mxu0 %v503
    %622 = vmatpush.msra.mxu0 %v502
    %623 = vmatpush.msra.mxu0 %v501
    %624 = vmatpush.msra.mxu0 %v500
    %625 = vmatpush.msra.mxu0 %v499
    %626 = vmatmul.f32.gmra.mxu0 %v598
    %v627 = vpop.f32.mrf.mxu0
    %v628 = vadd.f32 %v581, %v627
    %629 = vmatmul.f32.gmra.mxu0 %v600
    %v630 = vpop.f32.mrf.mxu0
    %v631 = vadd.f32 %v584, %v630
    %632 = vmatmul.f32.gmra.mxu0 %v602
    %v633 = vpop.f32.mrf.mxu0
    %v634 = vadd.f32 %v587, %v633
    %635 = vmatmul.f32.gmra.mxu0 %v604
    %v636 = vpop.f32.mrf.mxu0
    %v637 = vadd.f32 %v590, %v636
    %638 = vmatmul.f32.gmra.mxu0 %v606
    %v639 = vpop.f32.mrf.mxu0
    %v640 = vadd.f32 %v593, %v639
    %641 = vmatmul.f32.gmra.mxu0 %v608
    %v642 = vpop.f32.mrf.mxu0
    %v643 = vadd.f32 %v596, %v642
    %644 = vdwg.mxu0
    %vm645 = vcmask 1045504
    %v646 = vrot.slane %v487, 2
    %v647 = vrot.slane %v493, 2
    %v648 = vsel %vm645, %v646, %v647
    %v649 = vrot.slane %v488, 2
    %v650 = vrot.slane %v494, 2
    %v651 = vsel %vm645, %v649, %v650
    %v652 = vrot.slane %v489, 2
    %v653 = vrot.slane %v495, 2
    %v654 = vsel %vm645, %v652, %v653
    %v655 = vrot.slane %v490, 2
    %v656 = vrot.slane %v496, 2
    %v657 = vsel %vm645, %v655, %v656
    %v658 = vrot.slane %v491, 2
    %v659 = vrot.slane %v497, 2
    %v660 = vsel %vm645, %v658, %v659
    %v661 = vrot.slane %v492, 2
    %v662 = vrot.slane %v498, 2
    %v663 = vsel %vm645, %v661, %v662
    %v664 = vld [vmem:[#allocation4 + $0xa0] sm:$0xff]
    %v665 = vld [vmem:[#allocation4 + $0xa8] sm:$0xff]
    %v666 = vld [vmem:[#allocation4 + $0xb0] sm:$0xff]
    %v667 = vld [vmem:[#allocation4 + $0xb8] sm:$0xff]
    %v668 = vld [vmem:[#allocation4 + $0xc0] sm:$0xff]
    %v669 = vld [vmem:[#allocation4 + $0xc8] sm:$0xff]
    %v670 = vld [vmem:[#allocation4 + $0xd0] sm:$0xff]
    %v671 = vld [vmem:[#allocation4 + $0xd8] sm:$0xff]
    %v672 = vld [vmem:[#allocation4 + $0xe0] sm:$0xff]
    %v673 = vld [vmem:[#allocation4 + $0xe8] sm:$0xff]
    %v674 = vsel %vm550, %v648, 0
    %v676 = vsel %vm550, %v651, 0
    %v678 = vsel %vm550, %v654, 0
    %v680 = vsel %vm550, %v657, 0
    %v682 = vsel %vm550, %v660, 0
    %v684 = vsel %vm550, %v663, 0
    %686 = vmatpush.msra.mxu0 0.0
    %687 = vmatpush.msra.mxu0 0.0
    %688 = vmatpush.msra.mxu0 0.0
    %689 = vmatpush.msra.mxu0 0.0
    %690 = vmatpush.msra.mxu0 0.0
    %691 = vmatpush.msra.mxu0 0.0
    %692 = vmatpush.msra.mxu0 %v673
    %693 = vmatpush.msra.mxu0 %v672
    %694 = vmatpush.msra.mxu0 %v671
    %695 = vmatpush.msra.mxu0 %v670
    %696 = vmatpush.msra.mxu0 %v669
    %697 = vmatpush.msra.mxu0 %v668
    %698 = vmatpush.msra.mxu0 %v667
    %699 = vmatpush.msra.mxu0 %v666
    %700 = vmatpush.msra.mxu0 %v665
    %701 = vmatpush.msra.mxu0 %v664
    %702 = vmatmul.f32.gmra.mxu0 %v674
    %v703 = vpop.f32.mrf.mxu0
    %v704 = vadd.f32 0.0, %v703
    %705 = vmatmul.f32.gmra.mxu0 %v676
    %v706 = vpop.f32.mrf.mxu0
    %v707 = vadd.f32 0.0, %v706
    %708 = vmatmul.f32.gmra.mxu0 %v678
    %v709 = vpop.f32.mrf.mxu0
    %v710 = vadd.f32 0.0, %v709
    %711 = vmatmul.f32.gmra.mxu0 %v680
    %v712 = vpop.f32.mrf.mxu0
    %v713 = vadd.f32 0.0, %v712
    %714 = vmatmul.f32.gmra.mxu0 %v682
    %v715 = vpop.f32.mrf.mxu0
    %v716 = vadd.f32 0.0, %v715
    %717 = vmatmul.f32.gmra.mxu0 %v684
    %v718 = vpop.f32.mrf.mxu0
    %v719 = vadd.f32 0.0, %v718
    %720 = vdwg.mxu0
    %v721 = vadd.f32 %v628, %v704
    %v722 = vadd.f32 %v631, %v707
    %v723 = vadd.f32 %v634, %v710
    %v724 = vadd.f32 %v637, %v713
    %v725 = vadd.f32 %v640, %v716
    %v726 = vadd.f32 %v643, %v719
    %v727 = vld [vmem:[#allocation4 + $0xf0] sm:$0x1]
    %v728 = vperm.slane %v727, 0
    %v729 = vadd.f32 %v721, %v728
    %v730 = vadd.f32 %v722, %v728
    %v731 = vadd.f32 %v723, %v728
    %v732 = vadd.f32 %v724, %v728
    %v733 = vadd.f32 %v725, %v728
    %v734 = vadd.f32 %v726, %v728
    %v735 = vtanh.pop %v729
    %v736 = vtanh.pop %v730
    %v737 = vtanh.pop %v731
    %v738 = vtanh.pop %v732
    %v739 = vtanh.pop %v733
    %v740 = vtanh.pop %v734
    %v741 = vadd.f32 %v735, 1.0
    %v742 = vadd.f32 %v736, 1.0
    %v743 = vadd.f32 %v737, 1.0
    %v744 = vadd.f32 %v738, 1.0
    %v745 = vadd.f32 %v739, 1.0
    %v746 = vadd.f32 %v740, 1.0
    %v747 = vmul.f32 %v741, 0.5
    %v748 = vmul.f32 %v742, 0.5
    %v749 = vmul.f32 %v743, 0.5
    %v750 = vmul.f32 %v744, 0.5
    %v751 = vmul.f32 %v745, 0.5
    %v752 = vmul.f32 %v746, 0.5
    %759 = vrot.lane.b32.xlu0 %v747, 96
    %v760 = vpop.permute.xlu0 %759
    %761 = vrot.lane.b32.xlu0 %v748, 96
    %v762 = vpop.permute.xlu0 %761
    %763 = vrot.lane.b32.xlu0 %v749, 96
    %v764 = vpop.permute.xlu0 %763
    %765 = vrot.lane.b32.xlu0 %v750, 96
    %v766 = vpop.permute.xlu0 %765
    %767 = vrot.lane.b32.xlu0 %v751, 96
    %v768 = vpop.permute.xlu0 %767
    %769 = vrot.lane.b32.xlu0 %v752, 96
    %v770 = vpop.permute.xlu0 %769
    %777 = vrot.lane.b32.xlu0 %v747, 64
    %v778 = vpop.permute.xlu0 %777
    %779 = vrot.lane.b32.xlu0 %v748, 64
    %v780 = vpop.permute.xlu0 %779
    %781 = vrot.lane.b32.xlu0 %v749, 64
    %v782 = vpop.permute.xlu0 %781
    %783 = vrot.lane.b32.xlu0 %v750, 64
    %v784 = vpop.permute.xlu0 %783
    %785 = vrot.lane.b32.xlu0 %v751, 64
    %v786 = vpop.permute.xlu0 %785
    %787 = vrot.lane.b32.xlu0 %v752, 64
    %v788 = vpop.permute.xlu0 %787
    %795 = vrot.lane.b32.xlu0 %v747, 32
    %v796 = vpop.permute.xlu0 %795
    %797 = vrot.lane.b32.xlu0 %v748, 32
    %v798 = vpop.permute.xlu0 %797
    %799 = vrot.lane.b32.xlu0 %v749, 32
    %v800 = vpop.permute.xlu0 %799
    %801 = vrot.lane.b32.xlu0 %v750, 32
    %v802 = vpop.permute.xlu0 %801
    %803 = vrot.lane.b32.xlu0 %v751, 32
    %v804 = vpop.permute.xlu0 %803
    %805 = vrot.lane.b32.xlu0 %v752, 32
    %v806 = vpop.permute.xlu0 %805
    %813 = vst.msk [vmem:[%s5] sm:$0xff] %vm90, %v747
    %814 = vst.msk [vmem:[%s5 + $0x8] sm:$0xff] %vm90, %v760
    %815 = vst.msk [vmem:[%s5 + $0x10] sm:$0xff] %vm90, %v778
    %816 = vst.msk [vmem:[%s5 + $0x18] sm:$0xff] %vm90, %v796
    %817 = vst.msk [vmem:[%s5 + $0x20] sm:$0xff] %vm90, %v748
    %818 = vst.msk [vmem:[%s5 + $0x28] sm:$0xff] %vm90, %v762
    %819 = vst.msk [vmem:[%s5 + $0x30] sm:$0xff] %vm90, %v780
    %820 = vst.msk [vmem:[%s5 + $0x38] sm:$0xff] %vm90, %v798
    %821 = vst.msk [vmem:[%s5 + $0x40] sm:$0xff] %vm90, %v749
    %822 = vst.msk [vmem:[%s5 + $0x48] sm:$0xff] %vm90, %v764
    %823 = vst.msk [vmem:[%s5 + $0x50] sm:$0xff] %vm90, %v782
    %824 = vst.msk [vmem:[%s5 + $0x58] sm:$0xff] %vm90, %v800
    %825 = vst.msk [vmem:[%s5 + $0x60] sm:$0xff] %vm90, %v750
    %826 = vst.msk [vmem:[%s5 + $0x68] sm:$0xff] %vm90, %v766
    %827 = vst.msk [vmem:[%s5 + $0x70] sm:$0xff] %vm90, %v784
    %828 = vst.msk [vmem:[%s5 + $0x78] sm:$0xff] %vm90, %v802
    %829 = vst.msk [vmem:[%s5 + $0x80] sm:$0xff] %vm90, %v751
    %830 = vst.msk [vmem:[%s5 + $0x88] sm:$0xff] %vm90, %v768
    %831 = vst.msk [vmem:[%s5 + $0x90] sm:$0xff] %vm90, %v786
    %832 = vst.msk [vmem:[%s5 + $0x98] sm:$0xff] %vm90, %v804
    %833 = vst.msk [vmem:[%s5 + $0xa0] sm:$0xff] %vm90, %v752
    %834 = vst.msk [vmem:[%s5 + $0xa8] sm:$0xff] %vm90, %v770
    %835 = vst.msk [vmem:[%s5 + $0xb0] sm:$0xff] %vm90, %v788
    %836 = vst.msk [vmem:[%s5 + $0xb8] sm:$0xff] %vm90, %v806
    %v837 = vtanh.pop %v256
    %v838 = vadd.f32 %v837, 1.0
    %v839 = vmul.f32 %v838, 0.5
    %v840 = vld [vmem:[#allocation6] sm:$0xff]
    %v841 = vld [vmem:[#allocation6 + $0x8] sm:$0xff]
    %v842 = vld [vmem:[#allocation6 + $0x10] sm:$0xff]
    %v843 = vld [vmem:[#allocation6 + $0x18] sm:$0xff]
    %v844 = vld [vmem:[#allocation6 + $0x20] sm:$0xff]
    %v845 = vld [vmem:[#allocation6 + $0x28] sm:$0xff]
    %v846 = vld [vmem:[#allocation6 + $0x30] sm:$0xff]
    %v847 = vld [vmem:[#allocation6 + $0x38] sm:$0xff]
    %v848 = vld [vmem:[#allocation6 + $0x40] sm:$0xff]
    %v849 = vld [vmem:[#allocation6 + $0x48] sm:$0xff]
    %v850 = vld [vmem:[#allocation6 + $0x50] sm:$0xff]
    %v851 = vld [vmem:[#allocation6 + $0x58] sm:$0xff]
    %v852 = vld [vmem:[#allocation6 + $0x60] sm:$0xff]
    %v853 = vld [vmem:[#allocation6 + $0x68] sm:$0xff]
    %v854 = vld [vmem:[#allocation6 + $0x70] sm:$0xff]
    %v855 = vld [vmem:[#allocation6 + $0x78] sm:$0xff]
    %s856 = scalar_lea.vmem [#allocation6], 288
    %v857 = vld [vmem:[%s856] ss:$8 sm:$0x3]
    %v859 = vperm.slane %v857, 0
    %v860 = vperm.slane %v857, 1
    %864 = vrot.lane.b32.xlu0 %v256, 120
    %v865 = vpop.permute.xlu0 %864
    %vm866 = vcmask 523264
    %v867 = vsel %vm866, %v865, 0
    %869 = vmatpush.msra.mxu0 0.0
    %870 = vmatpush.msra.mxu0 0.0
    %871 = vmatpush.msra.mxu0 0.0
    %872 = vmatpush.msra.mxu0 0.0
    %873 = vmatpush.msra.mxu0 0.0
    %874 = vmatpush.msra.mxu0 0.0
    %875 = vmatpush.msra.mxu0 0.0
    %876 = vmatpush.msra.mxu0 0.0
    %877 = vmatpush.msra.mxu0 %v854
    %878 = vmatpush.msra.mxu0 %v852
    %879 = vmatpush.msra.mxu0 %v850
    %880 = vmatpush.msra.mxu0 %v848
    %881 = vmatpush.msra.mxu0 %v846
    %882 = vmatpush.msra.mxu0 %v844
    %883 = vmatpush.msra.mxu0 %v842
    %884 = vmatpush.msra.mxu0 %v840
    %885 = vmatmul.f32.gmra.mxu0 %v867
    %v886 = vpop.f32.mrf.mxu0
    %v887 = vadd.f32 %v859, %v886
    %888 = vdwg.mxu0
    %889 = vmatpush.msra.mxu0 0.0
    %890 = vmatpush.msra.mxu0 0.0
    %891 = vmatpush.msra.mxu0 0.0
    %892 = vmatpush.msra.mxu0 0.0
    %893 = vmatpush.msra.mxu0 0.0
    %894 = vmatpush.msra.mxu0 0.0
    %895 = vmatpush.msra.mxu0 0.0
    %896 = vmatpush.msra.mxu0 0.0
    %897 = vmatpush.msra.mxu0 %v855
    %898 = vmatpush.msra.mxu0 %v853
    %899 = vmatpush.msra.mxu0 %v851
    %900 = vmatpush.msra.mxu0 %v849
    %901 = vmatpush.msra.mxu0 %v847
    %902 = vmatpush.msra.mxu0 %v845
    %903 = vmatpush.msra.mxu0 %v843
    %904 = vmatpush.msra.mxu0 %v841
    %905 = vmatmul.f32.gmra.mxu0 %v867
    %v906 = vpop.f32.mrf.mxu0
    %v907 = vadd.f32 %v860, %v906
    %908 = vdwg.mxu0
    %v909 = vld [vmem:[#allocation6 + $0x80] sm:$0xff]
    %v910 = vld [vmem:[#allocation6 + $0x90] sm:$0xff]
    %v911 = vld [vmem:[#allocation6 + $0x121] ss:$0 sm:$0xff]
    %vm912 = vcmask 130048
    %v914 = vsel %vm912, 0.0, 0
    %916 = vmatpush.msra.mxu0 0.0
    %917 = vmatpush.msra.mxu0 0.0
    %918 = vmatpush.msra.mxu0 0.0
    %919 = vmatpush.msra.mxu0 0.0
    %920 = vmatpush.msra.mxu0 0.0
    %921 = vmatpush.msra.mxu0 0.0
    %922 = vmatpush.msra.mxu0 0.0
    %923 = vmatpush.msra.mxu0 0.0
    %924 = vmatpush.msra.mxu0 0.0
    %925 = vmatpush.msra.mxu0 0.0
    %926 = vmatpush.msra.mxu0 0.0
    %927 = vmatpush.msra.mxu0 0.0
    %928 = vmatpush.msra.mxu0 0.0
    %929 = vmatpush.msra.mxu0 0.0
    %930 = vmatpush.msra.mxu0 %v910
    %931 = vmatpush.msra.mxu0 %v909
    %932 = vmatmul.f32.gmra.mxu0 %v914
    %v933 = vpop.f32.mrf.mxu0
    %v934 = vadd.f32 %v911, %v933
    %935 = vdwg.mxu0
    %v936 = vadd.f32 %v887, %v934
    %v937 = vxor.u32 %v936, 2147483648
    %v938 = vmul.f32 %v937, 1.442695
    %v939 = vpow.pop %v938
    %v940 = vadd.f32 %v939, 1.0
    %v941 = vrcp.pop %v940
    %v942 = vmul.f32 %v940, %v941
    %v943 = vsub.f32 1.0, %v942
    %v944 = vmul.f32 %v941, %v943
    %v945 = vadd.f32 %v941, %v944
    %vm946 = vweird.f32 %v940
    %vm947 = vweird.f32 %v941
    %vm948 = vmor %vm946, %vm947
    %v949 = vsel %vm948, %v941, %v945
    %v950 = vand.u32 2147483647, %v940
    %vm951 = vcmp.eq.f32.partialorder %v950, 8.507059e+37
    %v952 = vand.u32 %v940, 2147483648
    %v953 = vor.u32 1.1754944e-38, %v952
    %v954 = vsel %vm951, %v953, %v949
    %v955 = vmul.f32 1.0, %v954
    %957 = vrot.lane.b32.xlu0 %v934, 96
    %v958 = vpop.permute.xlu0 %957
    %v960 = vmul.f32 %v955, %v958
    %962 = vrot.lane.b32.xlu0 %v960, 32
    %v963 = vpop.permute.xlu0 %962
    %v965 = vadd.f32 %v887, %v963
    %v966 = vtanh.pop %v965
    %v967 = vsub.f32 1.0, %v955
    %969 = vrot.lane.b32.xlu0 %v966, 112
    %v970 = vpop.permute.xlu0 %969
    %v972 = vmul.f32 %v967, %v970
    %v973 = vmul.f32 %v955, 0.0
    %v974 = vadd.f32 %v972, %v973
    %976 = vrot.lane.b32.xlu0 %v974, 112
    %v977 = vpop.permute.xlu0 %976
    %v978 = vsel %vm912, %v977, 0
    %980 = vmatpush.msra.mxu0 0.0
    %981 = vmatpush.msra.mxu0 0.0
    %982 = vmatpush.msra.mxu0 0.0
    %983 = vmatpush.msra.mxu0 0.0
    %984 = vmatpush.msra.mxu0 0.0
    %985 = vmatpush.msra.mxu0 0.0
    %986 = vmatpush.msra.mxu0 0.0
    %987 = vmatpush.msra.mxu0 0.0
    %988 = vmatpush.msra.mxu0 0.0
    %989 = vmatpush.msra.mxu0 0.0
    %990 = vmatpush.msra.mxu0 0.0
    %991 = vmatpush.msra.mxu0 0.0
    %992 = vmatpush.msra.mxu0 0.0
    %993 = vmatpush.msra.mxu0 0.0
    %994 = vmatpush.msra.mxu0 %v910
    %995 = vmatpush.msra.mxu0 %v909
    %996 = vmatmul.f32.gmra.mxu0 %v978
    %v997 = vpop.f32.mrf.mxu0
    %v998 = vadd.f32 %v911, %v997
    %999 = vdwg.mxu0
    %1001 = vrot.lane.b32.xlu0 %v998, 48
    %v1002 = vpop.permute.xlu0 %1001
    %v1004 = vadd.f32 %v887, %v1002
    %v1005 = vxor.u32 %v1004, 2147483648
    %v1006 = vmul.f32 %v1005, 1.442695
    %v1007 = vpow.pop %v1006
    %v1008 = vadd.f32 %v1007, 1.0
    %v1009 = vrcp.pop %v1008
    %v1010 = vmul.f32 %v1008, %v1009
    %v1011 = vsub.f32 1.0, %v1010
    %v1012 = vmul.f32 %v1009, %v1011
    %v1013 = vadd.f32 %v1009, %v1012
    %vm1014 = vweird.f32 %v1008
    %vm1015 = vweird.f32 %v1009
    %vm1016 = vmor %vm1014, %vm1015
    %v1017 = vsel %vm1016, %v1009, %v1013
    %v1018 = vand.u32 2147483647, %v1008
    %vm1019 = vcmp.eq.f32.partialorder %v1018, 8.507059e+37
    %v1020 = vand.u32 %v1008, 2147483648
    %v1021 = vor.u32 1.1754944e-38, %v1020
    %v1022 = vsel %vm1019, %v1021, %v1017
    %v1023 = vmul.f32 1.0, %v1022
    %1024 = vrot.lane.b32.xlu0 %v998, 16
    %v1025 = vpop.permute.xlu0 %1024
    %v1027 = vmul.f32 %v1023, %v1025
    %1029 = vrot.lane.b32.xlu0 %v1027, 32
    %v1030 = vpop.permute.xlu0 %1029
    %v1032 = vadd.f32 %v887, %v1030
    %v1033 = vtanh.pop %v1032
    %v1034 = vsub.f32 1.0, %v1023
    %1036 = vrot.lane.b32.xlu0 %v1033, 112
    %v1037 = vpop.permute.xlu0 %1036
    %v1039 = vmul.f32 %v1034, %v1037
    %1040 = vrot.lane.b32.xlu0 %v974, 48
    %v1041 = vpop.permute.xlu0 %1040
    %v1043 = vmul.f32 %v1023, %v1041
    %v1044 = vadd.f32 %v1039, %v1043
    %1046 = vrot.lane.b32.xlu0 %v1044, 64
    %v1047 = vpop.permute.xlu0 %1046
    %v1048 = vsel %vm912, %v1047, 0
    %1050 = vmatpush.msra.mxu0 0.0
    %1051 = vmatpush.msra.mxu0 0.0
    %1052 = vmatpush.msra.mxu0 0.0
    %1053 = vmatpush.msra.mxu0 0.0
    %1054 = vmatpush.msra.mxu0 0.0
    %1055 = vmatpush.msra.mxu0 0.0
    %1056 = vmatpush.msra.mxu0 0.0
    %1057 = vmatpush.msra.mxu0 0.0
    %1058 = vmatpush.msra.mxu0 0.0
    %1059 = vmatpush.msra.mxu0 0.0
    %1060 = vmatpush.msra.mxu0 0.0
    %1061 = vmatpush.msra.mxu0 0.0
    %1062 = vmatpush.msra.mxu0 0.0
    %1063 = vmatpush.msra.mxu0 0.0
    %1064 = vmatpush.msra.mxu0 %v910
    %1065 = vmatpush.msra.mxu0 %v909
    %1066 = vmatmul.f32.gmra.mxu0 %v1048
    %v1067 = vpop.f32.mrf.mxu0
    %v1068 = vadd.f32 %v911, %v1067
    %1069 = vdwg.mxu0
    %1071 = vrot.lane.b32.xlu0 %v1068, 96
    %v1072 = vpop.permute.xlu0 %1071
    %v1074 = vadd.f32 %v887, %v1072
    %v1075 = vxor.u32 %v1074, 2147483648
    %v1076 = vmul.f32 %v1075, 1.442695
    %v1077 = vpow.pop %v1076
    %v1078 = vadd.f32 %v1077, 1.0
    %v1079 = vrcp.pop %v1078
    %v1080 = vmul.f32 %v1078, %v1079
    %v1081 = vsub.f32 1.0, %v1080
    %v1082 = vmul.f32 %v1079, %v1081
    %v1083 = vadd.f32 %v1079, %v1082
    %vm1084 = vweird.f32 %v1078
    %vm1085 = vweird.f32 %v1079
    %vm1086 = vmor %vm1084, %vm1085
    %v1087 = vsel %vm1086, %v1079, %v1083
    %v1088 = vand.u32 2147483647, %v1078
    %vm1089 = vcmp.eq.f32.partialorder %v1088, 8.507059e+37
    %v1090 = vand.u32 %v1078, 2147483648
    %v1091 = vor.u32 1.1754944e-38, %v1090
    %v1092 = vsel %vm1089, %v1091, %v1087
    %v1093 = vmul.f32 1.0, %v1092
    %1094 = vrot.lane.b32.xlu0 %v1068, 64
    %v1095 = vpop.permute.xlu0 %1094
    %v1097 = vmul.f32 %v1093, %v1095
    %1099 = vrot.lane.b32.xlu0 %v1097, 32
    %v1100 = vpop.permute.xlu0 %1099
    %v1102 = vadd.f32 %v907, %v1100
    %v1103 = vtanh.pop %v1102
    %v1104 = vsub.f32 1.0, %v1093
    %1106 = vrot.lane.b32.xlu0 %v1103, 112
    %v1107 = vpop.permute.xlu0 %1106
    %v1109 = vmul.f32 %v1104, %v1107
    %1110 = vrot.lane.b32.xlu0 %v1044, 48
    %v1111 = vpop.permute.xlu0 %1110
    %v1113 = vmul.f32 %v1093, %v1111
    %v1114 = vadd.f32 %v1109, %v1113
    %1116 = vrot.lane.b32.xlu0 %v1114, 16
    %v1117 = vpop.permute.xlu0 %1116
    %v1118 = vsel %vm912, %v1117, 0
    %1120 = vmatpush.msra.mxu0 0.0
    %1121 = vmatpush.msra.mxu0 0.0
    %1122 = vmatpush.msra.mxu0 0.0
    %1123 = vmatpush.msra.mxu0 0.0
    %1124 = vmatpush.msra.mxu0 0.0
    %1125 = vmatpush.msra.mxu0 0.0
    %1126 = vmatpush.msra.mxu0 0.0
    %1127 = vmatpush.msra.mxu0 0.0
    %1128 = vmatpush.msra.mxu0 0.0
    %1129 = vmatpush.msra.mxu0 0.0
    %1130 = vmatpush.msra.mxu0 0.0
    %1131 = vmatpush.msra.mxu0 0.0
    %1132 = vmatpush.msra.mxu0 0.0
    %1133 = vmatpush.msra.mxu0 0.0
    %1134 = vmatpush.msra.mxu0 %v910
    %1135 = vmatpush.msra.mxu0 %v909
    %1136 = vmatmul.f32.gmra.mxu0 %v1118
    %v1137 = vpop.f32.mrf.mxu0
    %v1138 = vadd.f32 %v911, %v1137
    %1139 = vdwg.mxu0
    %1141 = vrot.lane.b32.xlu0 %v1138, 16
    %v1142 = vpop.permute.xlu0 %1141
    %v1144 = vadd.f32 %v907, %v1142
    %v1145 = vxor.u32 %v1144, 2147483648
    %v1146 = vmul.f32 %v1145, 1.442695
    %v1147 = vpow.pop %v1146
    %v1148 = vadd.f32 %v1147, 1.0
    %v1149 = vrcp.pop %v1148
    %v1150 = vmul.f32 %v1148, %v1149
    %v1151 = vsub.f32 1.0, %v1150
    %v1152 = vmul.f32 %v1149, %v1151
    %v1153 = vadd.f32 %v1149, %v1152
    %vm1154 = vweird.f32 %v1148
    %vm1155 = vweird.f32 %v1149
    %vm1156 = vmor %vm1154, %vm1155
    %v1157 = vsel %vm1156, %v1149, %v1153
    %v1158 = vand.u32 2147483647, %v1148
    %vm1159 = vcmp.eq.f32.partialorder %v1158, 8.507059e+37
    %v1160 = vand.u32 %v1148, 2147483648
    %v1161 = vor.u32 1.1754944e-38, %v1160
    %v1162 = vsel %vm1159, %v1161, %v1157
    %v1163 = vmul.f32 1.0, %v1162
    %1164 = vrot.lane.b32.xlu0 %v1138, 112
    %v1165 = vpop.permute.xlu0 %1164
    %v1167 = vmul.f32 %v1163, %v1165
    %1169 = vrot.lane.b32.xlu0 %v1167, 32
    %v1170 = vpop.permute.xlu0 %1169
    %v1172 = vadd.f32 %v907, %v1170
    %v1173 = vtanh.pop %v1172
    %v1174 = vsub.f32 1.0, %v1163
    %1176 = vrot.lane.b32.xlu0 %v1173, 112
    %v1177 = vpop.permute.xlu0 %1176
    %v1179 = vmul.f32 %v1174, %v1177
    %1180 = vrot.lane.b32.xlu0 %v1114, 48
    %v1181 = vpop.permute.xlu0 %1180
    %v1183 = vmul.f32 %v1163, %v1181
    %v1184 = vadd.f32 %v1179, %v1183
    %1186 = vrot.lane.b32.xlu0 %v1044, 80
    %v1187 = vpop.permute.xlu0 %1186
    %1190 = vrot.lane.b32.xlu0 %v1184, 16
    %v1191 = vpop.permute.xlu0 %1190
    %v1193 = vsel %vm912, %v977, %v1187
    %v1194 = vsel %vm90, %v1193, %v1181
    %vm1195 = vcmask 392192
    %v1196 = vsel %vm1195, %v1194, %v1191
    %v1197 = vld [vmem:[#allocation6 + $0xa0] sm:$0xff]
    %v1198 = vld [vmem:[#allocation6 + $0xb0] sm:$0xff]
    %v1199 = vld [vmem:[#allocation6 + $0xc0] sm:$0xff]
    %v1200 = vld [vmem:[#allocation6 + $0xd0] sm:$0xff]
    %v1201 = vld [vmem:[#allocation6 + $0xe0] sm:$0xff]
    %v1202 = vld [vmem:[#allocation6 + $0xf0] sm:$0xff]
    %v1203 = vld [vmem:[#allocation6 + $0x100] sm:$0xff]
    %v1204 = vld [vmem:[#allocation6 + $0x110] sm:$0xff]
    %v1205 = vld [vmem:[#allocation6 + $0x122] ss:$0 sm:$0xff]
    %v1207 = vsel %vm866, %v1196, 0
    %1209 = vmatpush.msra.mxu0 0.0
    %1210 = vmatpush.msra.mxu0 0.0
    %1211 = vmatpush.msra.mxu0 0.0
    %1212 = vmatpush.msra.mxu0 0.0
    %1213 = vmatpush.msra.mxu0 0.0
    %1214 = vmatpush.msra.mxu0 0.0
    %1215 = vmatpush.msra.mxu0 0.0
    %1216 = vmatpush.msra.mxu0 0.0
    %1217 = vmatpush.msra.mxu0 %v1204
    %1218 = vmatpush.msra.mxu0 %v1203
    %1219 = vmatpush.msra.mxu0 %v1202
    %1220 = vmatpush.msra.mxu0 %v1201
    %1221 = vmatpush.msra.mxu0 %v1200
    %1222 = vmatpush.msra.mxu0 %v1199
    %1223 = vmatpush.msra.mxu0 %v1198
    %1224 = vmatpush.msra.mxu0 %v1197
    %1225 = vmatmul.f32.gmra.mxu0 %v1207
    %v1226 = vpop.f32.mrf.mxu0
    %v1227 = vadd.f32 %v1205, %v1226
    %1228 = vdwg.mxu0
    %1230 = vrot.lane.b32.xlu0 %v1227, 8
    %v1231 = vpop.permute.xlu0 %1230
    %v1233 = vsel %vm430, %v839, %v1231
    %vm1234 = vcmask 390144
    %1235 = vst.msk [vmem:[%s6] sm:$0x3f] %vm1234, %v1233
    // Predicated region
    $region34: #{obs_out_forward.1} parent=1 // pred_check
      _
    $region35: #{obs_out_forward.1} parent=1 // pred_check_branch
      %1237 = sbr.rel (0) target = $region37
    $region36: #{obs_out_forward.1} parent=1 // pred_region
      _
    $region37: #{obs_out_forward.1} parent=1 // pred_fallthru
      _
    // Predicated region
    $region38: #{obs_out_forward.1} parent=1 // pred_check
      _
    $region39: #{obs_out_forward.1} parent=1 // pred_check_branch
      %1239 = sbr.rel (0) target = $region41
    $region40: #{obs_out_forward.1} parent=1 // pred_region
      _
    $region41: #{obs_out_forward.1} parent=1 // pred_fallthru
      _
    // Predicated region
    $region42: #{obs_out_forward.1} parent=1 // pred_check
      _
    $region43: #{obs_out_forward.1} parent=1 // pred_check_branch
      %1241 = sbr.rel (0) target = $region45
    $region44: #{obs_out_forward.1} parent=1 // pred_region
      _
    $region45: #{obs_out_forward.1} parent=1 // pred_fallthru
      _
    // Predicated region
    $region46: #{obs_out_forward.1} parent=1 // pred_check
      _
    $region47: #{obs_out_forward.1} parent=1 // pred_check_branch
      %1243 = sbr.rel (0) target = $region49
    $region48: #{obs_out_forward.1} parent=1 // pred_region
      _
    $region49: #{obs_out_forward.1} parent=1 // pred_fallthru
      _
    %1244 = vsyncpa [#allocation3], 1
    %1245 = vsyncpa [#allocation5], 1

</llo_original>
